<compile_context>
chip_gen: v7x
topology: tpu7x:2x2x1
jax: 0.10.0
libtpu: 0.0.40
codegen_flags: <defaults>
</compile_context>

<pallas_src>
import functools

import numpy as np
import jax
import jax.numpy as jnp
from jax.experimental import pallas as pl
from jax.experimental.pallas import tpu as pltpu

BN_EPS = 1e-5
LANES = 128


def deepfm_kernel(F, E, C,
                  gidx_ref,                    # VMEM [TILE_B, F] int32 (global rows)
                  dense_ref,                   # VMEM [TILE_B, D] bf16
                  tbl_ref,                     # VMEM [V_pad, LANES] f32, lane-pre-shifted
                  wdl_ref, bdl_ref,            # [D, LANES] bf16 / [1, LANES] f32
                  wl1_ref, bl1_ref, s1_ref, t1_ref,
                  wl2_ref, bl2_ref, s2_ref, t2_ref,
                  wout_ref, bout_ref,
                  out_ref):                    # VMEM [TILE_B, LANES] f32
    FE = F * E
    E1_LANE = FE                               # slab lane holding sum_f e1_f
    W1_LANE = FE + 1                           # dense_proj lane holding dense@w1d + b1d
    TILE_B = gidx_ref.shape[0]
    V_pad = tbl_ref.shape[0]

    # ---- multi-hot MXU gather ------------------------------------------------
    # slab[b] = sum_f tbl[gidx[b, f]].  Because the table is lane-pre-shifted per
    # feature, that sum is the full per-row embedding slab (e2_f at lanes
    # f*E..f*E+E-1) and lane E1_LANE already holds the order-1 sparse sum.
    gid = gidx_ref[...]
    vocab_iota = jax.lax.broadcasted_iota(jnp.int32, (TILE_B, V_pad), 1)
    multihot = jnp.where(vocab_iota == gid[:, 0:1], 1.0, 0.0)
    for f in range(1, F):
        multihot = multihot + jnp.where(vocab_iota == gid[:, f:f + 1], 1.0, 0.0)
    slab = jnp.dot(multihot, tbl_ref[...], preferred_element_type=jnp.float32)

    lane = jax.lax.broadcasted_iota(jnp.int32, (TILE_B, LANES), 1)
    is_e2 = lane < FE

    # ---- deep dense projection (order-1 dense term folded into column W1) -----
    dense_proj = jnp.dot(dense_ref[...], wdl_ref[...],
                         preferred_element_type=jnp.float32) + bdl_ref[...]

    # ---- order-1 ---------------------------------------------------------------
    order1 = slab[:, E1_LANE:E1_LANE + 1] + dense_proj[:, W1_LANE:W1_LANE + 1]

    # ---- order-2 (FM cross term), 8-aligned lane slices ------------------------
    sum_emb = slab[:, 0:E]
    for f in range(1, F):
        sum_emb = sum_emb + slab[:, f * E:(f + 1) * E]            # [TILE_B, E]
    square_sum = jnp.sum(sum_emb * sum_emb, axis=-1, keepdims=True)
    sum_square = jnp.sum(jnp.where(is_e2, slab * slab, 0.0), axis=-1, keepdims=True)
    order2 = 0.5 * (square_sum - sum_square)                      # [TILE_B, 1]

    # ---- deep input ------------------------------------------------------------
    # Lanes >= FE carry junk (e1 sum / folded order-1 column) but the matching
    # w_l1 rows are zero, so they contribute nothing.
    dnn_in = order1 + order2 + slab + jnp.maximum(dense_proj, 0.0)

    # ---- DNNModule stack: Linear -> BatchNorm(eval, folded affine) -> ReLU -> Dropout(id)
    h = jnp.dot(dnn_in.astype(jnp.bfloat16), wl1_ref[...],
                preferred_element_type=jnp.float32) + bl1_ref[...]
    h = jnp.maximum(h * s1_ref[...] + t1_ref[...], 0.0)
    h = jnp.dot(h.astype(jnp.bfloat16), wl2_ref[...],
                preferred_element_type=jnp.float32) + bl2_ref[...]
    h = jnp.maximum(h * s2_ref[...] + t2_ref[...], 0.0)
    logits = jnp.dot(h.astype(jnp.bfloat16), wout_ref[...],
                     preferred_element_type=jnp.float32) + bout_ref[...]

    # ---- eval head: softmax expectation + first-index argmax over C classes ---
    valid = lane < C
    logits_m = jnp.where(valid, logits, jnp.float32(-1e30))
    m = jnp.max(logits_m, axis=-1, keepdims=True)
    ex = jnp.where(valid, jnp.exp(logits_m - m), 0.0)
    probs = ex / jnp.sum(ex, axis=-1, keepdims=True)
    pred_prob = jnp.sum(probs * lane.astype(jnp.float32), axis=-1, keepdims=True)
    label = jnp.min(jnp.where(logits_m >= m, lane, LANES), axis=-1, keepdims=True)

    # Lane-dense output slab: lane 0 = expected class index, lane 1 = argmax label
    # (label carried as f32 -> exact while num_classes < 2**24).
    out_ref[...] = (jnp.where(lane == 0, pred_prob, 0.0)
                    + jnp.where(lane == 1, label.astype(jnp.float32), 0.0))


def init_params(key, sparse_vocab, len_dense, emb_size, hid_dims, num_classes):
    V = int(sum(sparse_vocab))
    F = len(sparse_vocab)
    FE = F * emb_size
    dims = [FE] + list(hid_dims)

    def u(k, shape, scale=0.1):
        return jax.random.uniform(k, shape, jnp.float32, -scale, scale)

    keys = iter(jax.random.split(key, 64))
    p = {
        "emb1": u(next(keys), (V, 1)),
        "emb2": u(next(keys), (V, emb_size)),
        "w1d": u(next(keys), (len_dense, 1)),
        "b1d": u(next(keys), (1, 1)),
        "wdl": u(next(keys), (len_dense, FE)),
        "bdl": u(next(keys), (1, FE)),
        "w_out": u(next(keys), (dims[-1], num_classes)),
        "b_out": u(next(keys), (1, num_classes)),
    }
    for li in range(1, len(dims)):
        h = dims[li]
        p[f"w_l{li}"] = u(next(keys), (dims[li - 1], h))
        p[f"b_l{li}"] = u(next(keys), (1, h))
        p[f"g{li}"] = jax.random.uniform(next(keys), (1, h), jnp.float32, 0.5, 1.5)
        p[f"be{li}"] = u(next(keys), (1, h))
        p[f"rm{li}"] = u(next(keys), (1, h))
        p[f"rv{li}"] = jax.random.uniform(next(keys), (1, h), jnp.float32, 0.5, 1.5)
    return p


def deepfm_forward(params, sparse, dense, sparse_vocab, emb_size, num_classes,
                   hid_dims, tile_b=None):
    B, F = sparse.shape
    E = emb_size
    FE = F * E
    V = int(sum(sparse_vocab))
    D = dense.shape[1]
    C = num_classes
    H1, H2 = hid_dims
    assert FE + 2 <= LANES and H1 <= LANES and H2 <= LANES and C <= LANES

    # Batch tile: large tiles fill the MXU M dimension and amortize per-step
    # pipeline overhead.  For the small test this collapses to a single grid step;
    # on v7x (2 TensorCores) keep Bp/tile_b even when the batch is large enough.
    Bp0 = -(-B // 8) * 8
    if tile_b is None:
        tile_b = min(256, Bp0)
    Bp = -(-B // tile_b) * tile_b

    # Global row indices into the fused embedding table.
    offsets = np.concatenate(([0], np.cumsum(sparse_vocab[:-1]))).astype(np.int32)
    gidx = sparse.astype(jnp.int32) + jnp.asarray(offsets)[None, :]
    dense_bf = dense.astype(jnp.bfloat16)        # only feeds the bf16 wdl matmul
    if Bp != B:
        gidx = jnp.pad(gidx, ((0, Bp - B), (0, 0)))     # padded rows gather row 0: safe,
        dense_bf = jnp.pad(dense_bf, ((0, Bp - B), (0, 0)))  # discarded after the call

    # Lane-pre-shifted fused embedding table: feature f's order-2 values at lanes
    # f*E..f*E+E-1, every order-1 value at lane FE.  Summing the F gathered rows
    # reconstructs the slab + order-1 sparse sum in one shot.
    V_pad = -(-max(V, 1) // LANES) * LANES
    tbl = jnp.zeros((V_pad, LANES), jnp.float32)
    tbl = tbl.at[:V, FE].set(params["emb1"][:, 0])
    for f in range(F):
        off, nv = int(offsets[f]), int(sparse_vocab[f])
        tbl = tbl.at[off:off + nv, f * E:(f + 1) * E].set(params["emb2"][off:off + nv])

    f32z = lambda shape: jnp.zeros(shape, jnp.float32)
    # Deep dense projection with the order-1 dense weight folded in as column FE+1.
    wdl_p = (f32z((D, LANES)).at[:, :FE].set(params["wdl"])
             .at[:, FE + 1].set(params["w1d"][:, 0]).astype(jnp.bfloat16))
    bdl_p = (f32z((1, LANES)).at[:, :FE].set(params["bdl"])
             .at[0, FE + 1].set(params["b1d"][0, 0]))
    wl1_p = f32z((LANES, LANES)).at[:FE, :H1].set(params["w_l1"]).astype(jnp.bfloat16)
    bl1_p = f32z((1, LANES)).at[:, :H1].set(params["b_l1"])
    wl2_p = f32z((LANES, LANES)).at[:H1, :H2].set(params["w_l2"]).astype(jnp.bfloat16)
    bl2_p = f32z((1, LANES)).at[:, :H2].set(params["b_l2"])
    wout_p = f32z((LANES, LANES)).at[:H2, :C].set(params["w_out"]).astype(jnp.bfloat16)
    bout_p = f32z((1, LANES)).at[:, :C].set(params["b_out"])

    def bn_fold(g, be, rm, rv, H):               # eval BatchNorm -> single affine
        scale = g * jax.lax.rsqrt(rv + BN_EPS)
        shift = be - rm * scale
        return (jnp.ones((1, LANES), jnp.float32).at[:, :H].set(scale),
                f32z((1, LANES)).at[:, :H].set(shift))

    s1, t1 = bn_fold(params["g1"], params["be1"], params["rm1"], params["rv1"], H1)
    s2, t2 = bn_fold(params["g2"], params["be2"], params["rm2"], params["rv2"], H2)

    kernel = functools.partial(deepfm_kernel, F, E, C)
    batch = lambda i: (i, 0)
    full = lambda i: (0, 0)

    out = pl.pallas_call(
        kernel,
        out_shape=jax.ShapeDtypeStruct((Bp, LANES), jnp.float32),
        grid=(Bp // tile_b,),
        in_specs=[
            pl.BlockSpec((tile_b, F), batch),        # global sparse indices (int32)
            pl.BlockSpec((tile_b, D), batch),        # dense features (bf16)
            pl.BlockSpec((V_pad, LANES), full),      # fused, lane-pre-shifted table
            pl.BlockSpec((D, LANES), full),          # wdl (+w1d column), bf16
            pl.BlockSpec((1, LANES), full),          # bdl (+b1d)
            pl.BlockSpec((LANES, LANES), full),      # w_l1 bf16
            pl.BlockSpec((1, LANES), full),          # b_l1
            pl.BlockSpec((1, LANES), full),          # bn1 scale
            pl.BlockSpec((1, LANES), full),          # bn1 shift
            pl.BlockSpec((LANES, LANES), full),      # w_l2 bf16
            pl.BlockSpec((1, LANES), full),          # b_l2
            pl.BlockSpec((1, LANES), full),          # bn2 scale
            pl.BlockSpec((1, LANES), full),          # bn2 shift
            pl.BlockSpec((LANES, LANES), full),      # w_out bf16
            pl.BlockSpec((1, LANES), full),          # b_out
        ],
        out_specs=pl.BlockSpec((tile_b, LANES), batch),
        compiler_params=pltpu.CompilerParams(
            dimension_semantics=("parallel",),
            vmem_limit_bytes=8 * 1024 * 1024,        # actual footprint is ~1-2 MiB
        ),
    )(gidx, dense_bf, tbl, wdl_p, bdl_p, wl1_p, bl1_p, s1, t1,
      wl2_p, bl2_p, s2, t2, wout_p, bout_p)

    return out[:B, 0], out[:B, 1].astype(jnp.int32)


def _mm(x, w):
    # Mirror the kernel's MXU precision: bf16 operands, f32 accumulation.
    return jnp.dot(x.astype(jnp.bfloat16), w.astype(jnp.bfloat16),
                   preferred_element_type=jnp.float32)


def deepfm_reference(params, sparse, dense, sparse_vocab, emb_size, num_classes):
    """Pure-JAX mirror of the PyTorch eval-mode forward (DNNModule stack inside
    DeepFM: Linear -> BatchNorm(eval) -> ReLU -> Dropout(identity), final Linear,
    softmax/argmax eval head)."""
    B, F = sparse.shape
    E = emb_size
    offsets = np.concatenate(([0], np.cumsum(sparse_vocab[:-1]))).astype(np.int32)
    gidx = sparse.astype(jnp.int32) + jnp.asarray(offsets)[None, :]

    e1 = jnp.take(params["emb1"], gidx.reshape(-1), axis=0).reshape(B, F)
    order_1 = (jnp.sum(e1, axis=1, keepdims=True)
               + _mm(dense, params["w1d"]) + params["b1d"])

    e2 = jnp.take(params["emb2"], gidx.reshape(-1), axis=0).reshape(B, F, E)
    sum_emb = jnp.sum(e2, axis=1)
    cross = 0.5 * (sum_emb * sum_emb - jnp.sum(e2 * e2, axis=1))
    order_2 = jnp.sum(cross, axis=1, keepdims=True)

    dnns = e2.reshape(B, F * E) + jax.nn.relu(_mm(dense, params["wdl"]) + params["bdl"])
    h = order_1 + order_2 + dnns

    for li in (1, 2):
        h = _mm(h, params[f"w_l{li}"]) + params[f"b_l{li}"]
        h = ((h - params[f"rm{li}"]) * jax.lax.rsqrt(params[f"rv{li}"] + BN_EPS)
             * params[f"g{li}"] + params[f"be{li}"])
        h = jax.nn.relu(h)                     # Dropout is identity in eval mode
    logits = _mm(h, params["w_out"]) + params["b_out"]

    probs = jax.nn.softmax(logits, axis=-1)
    label = jnp.argmax(logits, axis=-1).astype(jnp.int32)
    pred_prob = jnp.sum(probs * jnp.arange(num_classes, dtype=jnp.float32)[None, :],
                        axis=-1)
    return pred_prob, label


if __name__ == "__main__":
    key = jax.random.PRNGKey(0)
    k_p, k_s, k_d = jax.random.split(key, 3)

    sparse_vocab = [10, 7, 12, 9]   # nunique() of the 4 sparse features
    len_dense = 16                  # number of dense features
    emb_size = 8
    hid_dims = [128, 64]            # dnn_dims = [F*E] + hid_dims
    num_classes = 4
    B = 32

    params = init_params(k_p, sparse_vocab, len_dense, emb_size, hid_dims, num_classes)
    sparse = jax.random.randint(k_s, (B, len(sparse_vocab)), 0,
                                jnp.asarray(sparse_vocab, jnp.int32), dtype=jnp.int32)
    dense = jax.random.normal(k_d, (B, len_dense), jnp.float32)

    # tile_b auto-selects min(256, padded B) -> single grid step for this batch.
    prob, label = deepfm_forward(params, sparse, dense, sparse_vocab, emb_size,
                                 num_classes, hid_dims)
    jax.block_until_ready((prob, label))

    prob_ref, label_ref = deepfm_reference(params, sparse, dense, sparse_vocab,
                                           emb_size, num_classes)
    assert jnp.allclose(prob, prob_ref, atol=5e-3, rtol=5e-3), (prob, prob_ref)
    assert jnp.array_equal(label, label_ref), (label, label_ref)
    print("KERNEL_OK")
</pallas_src>

<mosaic_0001>
module attributes {stable_mosaic.version = 11 : i64} {
  func.func @deepfm_kernel(%arg0: i32, %arg1: memref<32x4xi32, #tpu.memory_space<vmem>>, %arg2: memref<32x16xbf16, #tpu.memory_space<vmem>>, %arg3: memref<128x128xf32, #tpu.memory_space<vmem>>, %arg4: memref<16x128xbf16, #tpu.memory_space<vmem>>, %arg5: memref<1x128xf32, #tpu.memory_space<vmem>>, %arg6: memref<128x128xbf16, #tpu.memory_space<vmem>>, %arg7: memref<1x128xf32, #tpu.memory_space<vmem>>, %arg8: memref<1x128xf32, #tpu.memory_space<vmem>>, %arg9: memref<1x128xf32, #tpu.memory_space<vmem>>, %arg10: memref<128x128xbf16, #tpu.memory_space<vmem>>, %arg11: memref<1x128xf32, #tpu.memory_space<vmem>>, %arg12: memref<1x128xf32, #tpu.memory_space<vmem>>, %arg13: memref<1x128xf32, #tpu.memory_space<vmem>>, %arg14: memref<128x128xbf16, #tpu.memory_space<vmem>>, %arg15: memref<1x128xf32, #tpu.memory_space<vmem>>, %arg16: memref<32x128xf32, #tpu.memory_space<vmem>>) attributes {dimension_semantics = [#tpu.dimension_semantics<parallel>], iteration_bounds = array<i64: 1>, scalar_prefetch = 0 : i64, scratch_operands = 0 : i64, tpu.core_type = #tpu.core_type<tc>, window_params = [{transform_indices = @transform_0, window_bounds = array<i64: 32, 4>}, {transform_indices = @transform_1, window_bounds = array<i64: 32, 16>}, {pipeline_mode = #tpu.pipeline_mode<synchronous>, transform_indices = @transform_2, window_bounds = array<i64: 128, 128>}, {pipeline_mode = #tpu.pipeline_mode<synchronous>, transform_indices = @transform_3, window_bounds = array<i64: 16, 128>}, {pipeline_mode = #tpu.pipeline_mode<synchronous>, transform_indices = @transform_4, window_bounds = array<i64: 1, 128>}, {pipeline_mode = #tpu.pipeline_mode<synchronous>, transform_indices = @transform_5, window_bounds = array<i64: 128, 128>}, {pipeline_mode = #tpu.pipeline_mode<synchronous>, transform_indices = @transform_6, window_bounds = array<i64: 1, 128>}, {pipeline_mode = #tpu.pipeline_mode<synchronous>, transform_indices = @transform_7, window_bounds = array<i64: 1, 128>}, {pipeline_mode = #tpu.pipeline_mode<synchronous>, transform_indices = @transform_8, window_bounds = array<i64: 1, 128>}, {pipeline_mode = #tpu.pipeline_mode<synchronous>, transform_indices = @transform_9, window_bounds = array<i64: 128, 128>}, {pipeline_mode = #tpu.pipeline_mode<synchronous>, transform_indices = @transform_10, window_bounds = array<i64: 1, 128>}, {pipeline_mode = #tpu.pipeline_mode<synchronous>, transform_indices = @transform_11, window_bounds = array<i64: 1, 128>}, {pipeline_mode = #tpu.pipeline_mode<synchronous>, transform_indices = @transform_12, window_bounds = array<i64: 1, 128>}, {pipeline_mode = #tpu.pipeline_mode<synchronous>, transform_indices = @transform_13, window_bounds = array<i64: 128, 128>}, {pipeline_mode = #tpu.pipeline_mode<synchronous>, transform_indices = @transform_14, window_bounds = array<i64: 1, 128>}, {transform_indices = @transform_15, window_bounds = array<i64: 32, 128>}]} {
    %c0 = arith.constant 0 : index
    %c0_0 = arith.constant 0 : index
    %0 = vector.load %arg1[%c0, %c0_0] : memref<32x4xi32, #tpu.memory_space<vmem>>, vector<32x4xi32>
    %1 = tpu.iota {dimensions = array<i32: 1>} : vector<32x128xi32>
    %2 = vector.extract_strided_slice %0 {offsets = [0, 0], sizes = [32, 1], strides = [1, 1]} : vector<32x4xi32> to vector<32x1xi32>
    %3 = vector.broadcast %2 : vector<32x1xi32> to vector<32x128xi32>
    %4 = arith.cmpi eq, %1, %3 : vector<32x128xi32>
    %cst = arith.constant 1.000000e+00 : f32
    %cst_1 = arith.constant 0.000000e+00 : f32
    %5 = vector.broadcast %cst : f32 to vector<32x128xf32>
    %6 = vector.broadcast %cst_1 : f32 to vector<32x128xf32>
    %7 = arith.select %4, %5, %6 : vector<32x128xi1>, vector<32x128xf32>
    %8 = vector.extract_strided_slice %0 {offsets = [0, 1], sizes = [32, 1], strides = [1, 1]} : vector<32x4xi32> to vector<32x1xi32>
    %9 = vector.broadcast %8 : vector<32x1xi32> to vector<32x128xi32>
    %10 = arith.cmpi eq, %1, %9 : vector<32x128xi32>
    %cst_2 = arith.constant 1.000000e+00 : f32
    %cst_3 = arith.constant 0.000000e+00 : f32
    %11 = vector.broadcast %cst_2 : f32 to vector<32x128xf32>
    %12 = vector.broadcast %cst_3 : f32 to vector<32x128xf32>
    %13 = arith.select %10, %11, %12 : vector<32x128xi1>, vector<32x128xf32>
    %14 = arith.addf %7, %13 : vector<32x128xf32>
    %15 = vector.extract_strided_slice %0 {offsets = [0, 2], sizes = [32, 1], strides = [1, 1]} : vector<32x4xi32> to vector<32x1xi32>
    %16 = vector.broadcast %15 : vector<32x1xi32> to vector<32x128xi32>
    %17 = arith.cmpi eq, %1, %16 : vector<32x128xi32>
    %cst_4 = arith.constant 1.000000e+00 : f32
    %cst_5 = arith.constant 0.000000e+00 : f32
    %18 = vector.broadcast %cst_4 : f32 to vector<32x128xf32>
    %19 = vector.broadcast %cst_5 : f32 to vector<32x128xf32>
    %20 = arith.select %17, %18, %19 : vector<32x128xi1>, vector<32x128xf32>
    %21 = arith.addf %14, %20 : vector<32x128xf32>
    %22 = vector.extract_strided_slice %0 {offsets = [0, 3], sizes = [32, 1], strides = [1, 1]} : vector<32x4xi32> to vector<32x1xi32>
    %23 = vector.broadcast %22 : vector<32x1xi32> to vector<32x128xi32>
    %24 = arith.cmpi eq, %1, %23 : vector<32x128xi32>
    %cst_6 = arith.constant 1.000000e+00 : f32
    %cst_7 = arith.constant 0.000000e+00 : f32
    %25 = vector.broadcast %cst_6 : f32 to vector<32x128xf32>
    %26 = vector.broadcast %cst_7 : f32 to vector<32x128xf32>
    %27 = arith.select %24, %25, %26 : vector<32x128xi1>, vector<32x128xf32>
    %28 = arith.addf %21, %27 : vector<32x128xf32>
    %c0_8 = arith.constant 0 : index
    %c0_9 = arith.constant 0 : index
    %29 = vector.load %arg3[%c0_8, %c0_9] : memref<128x128xf32, #tpu.memory_space<vmem>>, vector<128x128xf32>
    %cst_10 = arith.constant dense<0.000000e+00> : vector<32x128xf32>
    %30 = tpu.matmul %28, %29, %cst_10 {dimension_numbers = #tpu.dot_dimension_numbers<[1], [0], [0], [1], [0, 0, 1, 1], [], []>} : vector<32x128xf32>, vector<128x128xf32>, vector<32x128xf32> -> vector<32x128xf32>
    %31 = tpu.iota {dimensions = array<i32: 1>} : vector<32x128xi32>
    %c32_i32 = arith.constant 32 : i32
    %32 = vector.broadcast %c32_i32 : i32 to vector<32x128xi32>
    %33 = arith.cmpi slt, %31, %32 : vector<32x128xi32>
    %c0_11 = arith.constant 0 : index
    %c0_12 = arith.constant 0 : index
    %34 = vector.load %arg2[%c0_11, %c0_12] : memref<32x16xbf16, #tpu.memory_space<vmem>>, vector<32x16xbf16>
    %c0_13 = arith.constant 0 : index
    %c0_14 = arith.constant 0 : index
    %35 = vector.load %arg4[%c0_13, %c0_14] : memref<16x128xbf16, #tpu.memory_space<vmem>>, vector<16x128xbf16>
    %cst_15 = arith.constant dense<0.000000e+00> : vector<32x128xf32>
    %36 = tpu.matmul %34, %35, %cst_15 {dimension_numbers = #tpu.dot_dimension_numbers<[1], [0], [0], [1], [0, 0, 1, 1], [], []>} : vector<32x16xbf16>, vector<16x128xbf16>, vector<32x128xf32> -> vector<32x128xf32>
    %c0_16 = arith.constant 0 : index
    %c0_17 = arith.constant 0 : index
    %37 = vector.load %arg5[%c0_16, %c0_17] : memref<1x128xf32, #tpu.memory_space<vmem>>, vector<1x128xf32>
    %38 = vector.broadcast %37 : vector<1x128xf32> to vector<32x128xf32>
    %39 = arith.addf %36, %38 : vector<32x128xf32>
    %40 = vector.extract_strided_slice %30 {offsets = [0, 32], sizes = [32, 1], strides = [1, 1]} : vector<32x128xf32> to vector<32x1xf32>
    %41 = vector.extract_strided_slice %39 {offsets = [0, 33], sizes = [32, 1], strides = [1, 1]} : vector<32x128xf32> to vector<32x1xf32>
    %42 = arith.addf %40, %41 : vector<32x1xf32>
    %43 = vector.extract_strided_slice %30 {offsets = [0, 0], sizes = [32, 8], strides = [1, 1]} : vector<32x128xf32> to vector<32x8xf32>
    %44 = vector.extract_strided_slice %30 {offsets = [0, 8], sizes = [32, 8], strides = [1, 1]} : vector<32x128xf32> to vector<32x8xf32>
    %45 = arith.addf %43, %44 : vector<32x8xf32>
    %46 = vector.extract_strided_slice %30 {offsets = [0, 16], sizes = [32, 8], strides = [1, 1]} : vector<32x128xf32> to vector<32x8xf32>
    %47 = arith.addf %45, %46 : vector<32x8xf32>
    %48 = vector.extract_strided_slice %30 {offsets = [0, 24], sizes = [32, 8], strides = [1, 1]} : vector<32x128xf32> to vector<32x8xf32>
    %49 = arith.addf %47, %48 : vector<32x8xf32>
    %50 = arith.mulf %49, %49 : vector<32x8xf32>
    %cst_18 = arith.constant dense<0.000000e+00> : vector<32xf32>
    %51 = vector.multi_reduction <add>, %50, %cst_18 [1] : vector<32x8xf32> to vector<32xf32>
    %52 = vector.shape_cast %51 : vector<32xf32> to vector<32x1xf32>
    %53 = arith.mulf %30, %30 : vector<32x128xf32>
    %cst_19 = arith.constant 0.000000e+00 : f32
    %54 = vector.broadcast %cst_19 : f32 to vector<32x128xf32>
    %55 = arith.select %33, %53, %54 : vector<32x128xi1>, vector<32x128xf32>
    %cst_20 = arith.constant dense<0.000000e+00> : vector<32xf32>
    %56 = vector.multi_reduction <add>, %55, %cst_20 [1] : vector<32x128xf32> to vector<32xf32>
    %57 = vector.shape_cast %56 : vector<32xf32> to vector<32x1xf32>
    %58 = arith.subf %52, %57 : vector<32x1xf32>
    %cst_21 = arith.constant 5.000000e-01 : f32
    %59 = vector.broadcast %cst_21 : f32 to vector<32x1xf32>
    %60 = arith.mulf %59, %58 : vector<32x1xf32>
    %61 = arith.addf %42, %60 : vector<32x1xf32>
    %62 = vector.broadcast %61 : vector<32x1xf32> to vector<32x128xf32>
    %63 = arith.addf %62, %30 : vector<32x128xf32>
    %cst_22 = arith.constant 0.000000e+00 : f32
    %64 = vector.broadcast %cst_22 : f32 to vector<32x128xf32>
    %65 = arith.maximumf %39, %64 : vector<32x128xf32>
    %66 = arith.addf %63, %65 : vector<32x128xf32>
    %67 = arith.truncf %66 : vector<32x128xf32> to vector<32x128xbf16>
    %c0_23 = arith.constant 0 : index
    %c0_24 = arith.constant 0 : index
    %68 = vector.load %arg6[%c0_23, %c0_24] : memref<128x128xbf16, #tpu.memory_space<vmem>>, vector<128x128xbf16>
    %cst_25 = arith.constant dense<0.000000e+00> : vector<32x128xf32>
    %69 = tpu.matmul %67, %68, %cst_25 {dimension_numbers = #tpu.dot_dimension_numbers<[1], [0], [0], [1], [0, 0, 1, 1], [], []>} : vector<32x128xbf16>, vector<128x128xbf16>, vector<32x128xf32> -> vector<32x128xf32>
    %c0_26 = arith.constant 0 : index
    %c0_27 = arith.constant 0 : index
    %70 = vector.load %arg7[%c0_26, %c0_27] : memref<1x128xf32, #tpu.memory_space<vmem>>, vector<1x128xf32>
    %71 = vector.broadcast %70 : vector<1x128xf32> to vector<32x128xf32>
    %72 = arith.addf %69, %71 : vector<32x128xf32>
    %c0_28 = arith.constant 0 : index
    %c0_29 = arith.constant 0 : index
    %73 = vector.load %arg8[%c0_28, %c0_29] : memref<1x128xf32, #tpu.memory_space<vmem>>, vector<1x128xf32>
    %74 = vector.broadcast %73 : vector<1x128xf32> to vector<32x128xf32>
    %75 = arith.mulf %72, %74 : vector<32x128xf32>
    %c0_30 = arith.constant 0 : index
    %c0_31 = arith.constant 0 : index
    %76 = vector.load %arg9[%c0_30, %c0_31] : memref<1x128xf32, #tpu.memory_space<vmem>>, vector<1x128xf32>
    %77 = vector.broadcast %76 : vector<1x128xf32> to vector<32x128xf32>
    %78 = arith.addf %75, %77 : vector<32x128xf32>
    %cst_32 = arith.constant 0.000000e+00 : f32
    %79 = vector.broadcast %cst_32 : f32 to vector<32x128xf32>
    %80 = arith.maximumf %78, %79 : vector<32x128xf32>
    %81 = arith.truncf %80 : vector<32x128xf32> to vector<32x128xbf16>
    %c0_33 = arith.constant 0 : index
    %c0_34 = arith.constant 0 : index
    %82 = vector.load %arg10[%c0_33, %c0_34] : memref<128x128xbf16, #tpu.memory_space<vmem>>, vector<128x128xbf16>
    %cst_35 = arith.constant dense<0.000000e+00> : vector<32x128xf32>
    %83 = tpu.matmul %81, %82, %cst_35 {dimension_numbers = #tpu.dot_dimension_numbers<[1], [0], [0], [1], [0, 0, 1, 1], [], []>} : vector<32x128xbf16>, vector<128x128xbf16>, vector<32x128xf32> -> vector<32x128xf32>
    %c0_36 = arith.constant 0 : index
    %c0_37 = arith.constant 0 : index
    %84 = vector.load %arg11[%c0_36, %c0_37] : memref<1x128xf32, #tpu.memory_space<vmem>>, vector<1x128xf32>
    %85 = vector.broadcast %84 : vector<1x128xf32> to vector<32x128xf32>
    %86 = arith.addf %83, %85 : vector<32x128xf32>
    %c0_38 = arith.constant 0 : index
    %c0_39 = arith.constant 0 : index
    %87 = vector.load %arg12[%c0_38, %c0_39] : memref<1x128xf32, #tpu.memory_space<vmem>>, vector<1x128xf32>
    %88 = vector.broadcast %87 : vector<1x128xf32> to vector<32x128xf32>
    %89 = arith.mulf %86, %88 : vector<32x128xf32>
    %c0_40 = arith.constant 0 : index
    %c0_41 = arith.constant 0 : index
    %90 = vector.load %arg13[%c0_40, %c0_41] : memref<1x128xf32, #tpu.memory_space<vmem>>, vector<1x128xf32>
    %91 = vector.broadcast %90 : vector<1x128xf32> to vector<32x128xf32>
    %92 = arith.addf %89, %91 : vector<32x128xf32>
    %cst_42 = arith.constant 0.000000e+00 : f32
    %93 = vector.broadcast %cst_42 : f32 to vector<32x128xf32>
    %94 = arith.maximumf %92, %93 : vector<32x128xf32>
    %95 = arith.truncf %94 : vector<32x128xf32> to vector<32x128xbf16>
    %c0_43 = arith.constant 0 : index
    %c0_44 = arith.constant 0 : index
    %96 = vector.load %arg14[%c0_43, %c0_44] : memref<128x128xbf16, #tpu.memory_space<vmem>>, vector<128x128xbf16>
    %cst_45 = arith.constant dense<0.000000e+00> : vector<32x128xf32>
    %97 = tpu.matmul %95, %96, %cst_45 {dimension_numbers = #tpu.dot_dimension_numbers<[1], [0], [0], [1], [0, 0, 1, 1], [], []>} : vector<32x128xbf16>, vector<128x128xbf16>, vector<32x128xf32> -> vector<32x128xf32>
    %c0_46 = arith.constant 0 : index
    %c0_47 = arith.constant 0 : index
    %98 = vector.load %arg15[%c0_46, %c0_47] : memref<1x128xf32, #tpu.memory_space<vmem>>, vector<1x128xf32>
    %99 = vector.broadcast %98 : vector<1x128xf32> to vector<32x128xf32>
    %100 = arith.addf %97, %99 : vector<32x128xf32>
    %c4_i32 = arith.constant 4 : i32
    %101 = vector.broadcast %c4_i32 : i32 to vector<32x128xi32>
    %102 = arith.cmpi slt, %31, %101 : vector<32x128xi32>
    %cst_48 = arith.constant -1.000000e+30 : f32
    %103 = vector.broadcast %cst_48 : f32 to vector<32x128xf32>
    %104 = arith.select %102, %100, %103 : vector<32x128xi1>, vector<32x128xf32>
    %cst_49 = arith.constant dense<0xFF800000> : vector<32xf32>
    %105 = vector.multi_reduction <maximumf>, %104, %cst_49 [1] : vector<32x128xf32> to vector<32xf32>
    %106 = vector.shape_cast %105 : vector<32xf32> to vector<32x1xf32>
    %107 = vector.broadcast %106 : vector<32x1xf32> to vector<32x128xf32>
    %108 = arith.subf %104, %107 : vector<32x128xf32>
    %109 = math.exp %108 : vector<32x128xf32>
    %cst_50 = arith.constant 0.000000e+00 : f32
    %110 = vector.broadcast %cst_50 : f32 to vector<32x128xf32>
    %111 = arith.select %102, %109, %110 : vector<32x128xi1>, vector<32x128xf32>
    %cst_51 = arith.constant dense<0.000000e+00> : vector<32xf32>
    %112 = vector.multi_reduction <add>, %111, %cst_51 [1] : vector<32x128xf32> to vector<32xf32>
    %113 = vector.shape_cast %112 : vector<32xf32> to vector<32x1xf32>
    %114 = vector.broadcast %113 : vector<32x1xf32> to vector<32x128xf32>
    %115 = arith.divf %111, %114 : vector<32x128xf32>
    %116 = arith.sitofp %31 : vector<32x128xi32> to vector<32x128xf32>
    %117 = arith.mulf %115, %116 : vector<32x128xf32>
    %cst_52 = arith.constant dense<0.000000e+00> : vector<32xf32>
    %118 = vector.multi_reduction <add>, %117, %cst_52 [1] : vector<32x128xf32> to vector<32xf32>
    %119 = vector.shape_cast %118 : vector<32xf32> to vector<32x1xf32>
    %120 = vector.broadcast %106 : vector<32x1xf32> to vector<32x128xf32>
    %121 = arith.cmpf oge, %104, %120 : vector<32x128xf32>
    %c128_i32 = arith.constant 128 : i32
    %122 = vector.broadcast %c128_i32 : i32 to vector<32x128xi32>
    %123 = arith.select %121, %31, %122 : vector<32x128xi1>, vector<32x128xi32>
    %cst_53 = arith.constant dense<2147483647> : vector<32xi32>
    %124 = vector.multi_reduction <minsi>, %123, %cst_53 [1] : vector<32x128xi32> to vector<32xi32>
    %125 = vector.shape_cast %124 : vector<32xi32> to vector<32x1xi32>
    %c0_i32 = arith.constant 0 : i32
    %126 = vector.broadcast %c0_i32 : i32 to vector<32x128xi32>
    %127 = arith.cmpi eq, %31, %126 : vector<32x128xi32>
    %cst_54 = arith.constant 0.000000e+00 : f32
    %128 = vector.shape_cast %119 : vector<32x1xf32> to vector<32x1xf32>
    %129 = vector.broadcast %128 : vector<32x1xf32> to vector<32x128xf32>
    %130 = vector.broadcast %cst_54 : f32 to vector<32x128xf32>
    %131 = arith.select %127, %129, %130 : vector<32x128xi1>, vector<32x128xf32>
    %c1_i32 = arith.constant 1 : i32
    %132 = vector.broadcast %c1_i32 : i32 to vector<32x128xi32>
    %133 = arith.cmpi eq, %31, %132 : vector<32x128xi32>
    %134 = arith.sitofp %125 : vector<32x1xi32> to vector<32x1xf32>
    %cst_55 = arith.constant 0.000000e+00 : f32
    %135 = vector.shape_cast %134 : vector<32x1xf32> to vector<32x1xf32>
    %136 = vector.broadcast %135 : vector<32x1xf32> to vector<32x128xf32>
    %137 = vector.broadcast %cst_55 : f32 to vector<32x128xf32>
    %138 = arith.select %133, %136, %137 : vector<32x128xi1>, vector<32x128xf32>
    %139 = arith.addf %131, %138 : vector<32x128xf32>
    %c0_56 = arith.constant 0 : index
    %c0_57 = arith.constant 0 : index
    %140 = vector.load %arg16[%c0_56, %c0_57] : memref<32x128xf32, #tpu.memory_space<vmem>>, vector<32x128xf32>
    tpu.vector_store %arg16[%c0_56, %c0_57], %139 {strides = array<i32>} : memref<32x128xf32, #tpu.memory_space<vmem>>, vector<32x128xf32>,
    return
  }
  func.func @transform_0(%arg0: i32) -> (i32, i32) {
    %c0_i32 = arith.constant 0 : i32
    %c0_i32_0 = arith.constant 0 : i32
    return %arg0, %c0_i32 : i32, i32
  }
  func.func @transform_1(%arg0: i32) -> (i32, i32) {
    %c0_i32 = arith.constant 0 : i32
    %c0_i32_0 = arith.constant 0 : i32
    return %arg0, %c0_i32 : i32, i32
  }
  func.func @transform_2(%arg0: i32) -> (i32, i32) {
    %c0_i32 = arith.constant 0 : i32
    %c0_i32_0 = arith.constant 0 : i32
    %c0_i32_1 = arith.constant 0 : i32
    return %c0_i32, %c0_i32_0 : i32, i32
  }
  func.func @transform_3(%arg0: i32) -> (i32, i32) {
    %c0_i32 = arith.constant 0 : i32
    %c0_i32_0 = arith.constant 0 : i32
    %c0_i32_1 = arith.constant 0 : i32
    return %c0_i32, %c0_i32_0 : i32, i32
  }
  func.func @transform_4(%arg0: i32) -> (i32, i32) {
    %c0_i32 = arith.constant 0 : i32
    %c0_i32_0 = arith.constant 0 : i32
    %c0_i32_1 = arith.constant 0 : i32
    return %c0_i32, %c0_i32_0 : i32, i32
  }
  func.func @transform_5(%arg0: i32) -> (i32, i32) {
    %c0_i32 = arith.constant 0 : i32
    %c0_i32_0 = arith.constant 0 : i32
    %c0_i32_1 = arith.constant 0 : i32
    return %c0_i32, %c0_i32_0 : i32, i32
  }
  func.func @transform_6(%arg0: i32) -> (i32, i32) {
    %c0_i32 = arith.constant 0 : i32
    %c0_i32_0 = arith.constant 0 : i32
    %c0_i32_1 = arith.constant 0 : i32
    return %c0_i32, %c0_i32_0 : i32, i32
  }
  func.func @transform_7(%arg0: i32) -> (i32, i32) {
    %c0_i32 = arith.constant 0 : i32
    %c0_i32_0 = arith.constant 0 : i32
    %c0_i32_1 = arith.constant 0 : i32
    return %c0_i32, %c0_i32_0 : i32, i32
  }
  func.func @transform_8(%arg0: i32) -> (i32, i32) {
    %c0_i32 = arith.constant 0 : i32
    %c0_i32_0 = arith.constant 0 : i32
    %c0_i32_1 = arith.constant 0 : i32
    return %c0_i32, %c0_i32_0 : i32, i32
  }
  func.func @transform_9(%arg0: i32) -> (i32, i32) {
    %c0_i32 = arith.constant 0 : i32
    %c0_i32_0 = arith.constant 0 : i32
    %c0_i32_1 = arith.constant 0 : i32
    return %c0_i32, %c0_i32_0 : i32, i32
  }
  func.func @transform_10(%arg0: i32) -> (i32, i32) {
    %c0_i32 = arith.constant 0 : i32
    %c0_i32_0 = arith.constant 0 : i32
    %c0_i32_1 = arith.constant 0 : i32
    return %c0_i32, %c0_i32_0 : i32, i32
  }
  func.func @transform_11(%arg0: i32) -> (i32, i32) {
    %c0_i32 = arith.constant 0 : i32
    %c0_i32_0 = arith.constant 0 : i32
    %c0_i32_1 = arith.constant 0 : i32
    return %c0_i32, %c0_i32_0 : i32, i32
  }
  func.func @transform_12(%arg0: i32) -> (i32, i32) {
    %c0_i32 = arith.constant 0 : i32
    %c0_i32_0 = arith.constant 0 : i32
    %c0_i32_1 = arith.constant 0 : i32
    return %c0_i32, %c0_i32_0 : i32, i32
  }
  func.func @transform_13(%arg0: i32) -> (i32, i32) {
    %c0_i32 = arith.constant 0 : i32
    %c0_i32_0 = arith.constant 0 : i32
    %c0_i32_1 = arith.constant 0 : i32
    return %c0_i32, %c0_i32_0 : i32, i32
  }
  func.func @transform_14(%arg0: i32) -> (i32, i32) {
    %c0_i32 = arith.constant 0 : i32
    %c0_i32_0 = arith.constant 0 : i32
    %c0_i32_1 = arith.constant 0 : i32
    return %c0_i32, %c0_i32_0 : i32, i32
  }
  func.func @transform_15(%arg0: i32) -> (i32, i32) {
    %c0_i32 = arith.constant 0 : i32
    %c0_i32_0 = arith.constant 0 : i32
    return %arg0, %c0_i32 : i32, i32
  }
}

</mosaic_0001>

<llo_original>
// kernel: tpu_custom_call.1
$region0: #{tpu_custom_call.1}
  #allocation0 [shape = 'u32[]', space=smem, size = 0x4, offset = 0x4, fixed_abs, tag = 'smem constant byte address 0x4 - core index']
  #allocation1 [shape = 'u32[144,128]{1,0:T(1,128)}', space=vmem, size = 0x12000, scoped, tag = 'internal scratch']
  %s0 = inlined_call_operand.vmem [shape: s32[32,4], index: 0, kind: input, shape index: {}]
  %s1 = inlined_call_operand.vmem [shape: bf16[32,16], index: 1, kind: input, shape index: {}]
  %s2 = inlined_call_operand.hbm [shape: f32[128,128], index: 2, kind: input, shape index: {}]
  %s3 = inlined_call_operand.vmem [shape: bf16[16,128], index: 3, kind: input, shape index: {}]
  %s4 = inlined_call_operand.vmem [shape: f32[1,128], index: 4, kind: input, shape index: {}]
  %s5 = inlined_call_operand.vmem [shape: bf16[128,128], index: 5, kind: input, shape index: {}]
  %s6 = inlined_call_operand.vmem [shape: f32[1,128], index: 6, kind: input, shape index: {}]
  %s7 = inlined_call_operand.vmem [shape: f32[1,128], index: 7, kind: input, shape index: {}]
  %s8 = inlined_call_operand.vmem [shape: f32[1,128], index: 8, kind: input, shape index: {}]
  %s9 = inlined_call_operand.hbm [shape: bf16[128,128], index: 9, kind: input, shape index: {}]
  %s10 = inlined_call_operand.vmem [shape: f32[1,128], index: 10, kind: input, shape index: {}]
  %s11 = inlined_call_operand.vmem [shape: f32[1,128], index: 11, kind: input, shape index: {}]
  %s12 = inlined_call_operand.vmem [shape: f32[1,128], index: 12, kind: input, shape index: {}]
  %s13 = inlined_call_operand.hbm [shape: bf16[128,128], index: 13, kind: input, shape index: {}]
  %s14 = inlined_call_operand.vmem [shape: f32[1,128], index: 14, kind: input, shape index: {}]
  %s15 = inlined_call_operand.hbm [shape: f32[32,128], index: 15, kind: output, shape index: {}]
  %s16 = sld [smem:[#allocation0]]
  $region82: #{tpu_custom_call.1} parent=0
    _
  %s18 = ssub.s32 1, %s16
  %s19 = scalar_select 0, %s18, %s16
  $region1: #{tpu_custom_call.1} parent=0
    #allocation2 [shape = 'u8[65536]{0}', space=vmem, size = 0x10000, scoped, tag = 'input window, operand 2, single buffered']
    #allocation3 [shape = 's32[1]{0}', space=sflag, size = 0x4, scoped, tag = 'scoped memory for tpu_custom_call.1']
    #allocation4 [shape = 's32[1]{0}', space=sflag, size = 0x4, scoped, tag = 'scoped memory for tpu_custom_call.1']
    #allocation5 [shape = 'u8[32768]{0}', space=vmem, size = 0x8000, scoped, tag = 'input window, operand 9, single buffered']
    #allocation6 [shape = 's32[1]{0}', space=sflag, size = 0x4, scoped, tag = 'scoped memory for tpu_custom_call.1']
    #allocation7 [shape = 'u8[32768]{0}', space=vmem, size = 0x8000, scoped, tag = 'input window, operand 13, single buffered']
    #allocation8 [shape = 'u8[16384]{0}', space=vmem, size = 0x4000, scoped, tag = 'output window, operand 0, single buffered']
    %20 = vsyncpa [#allocation3], 0
    %21 = vsyncpa [#allocation6], 0
    %22 = vsyncpa [#allocation4], 0
    // Predicated region
    $region2: #{tpu_custom_call.1} parent=1 // pred_check
      _
    $region3: #{tpu_custom_call.1} parent=1 // pred_check_branch
      %24 = sbr.rel (0) target = $region5
    $region4: #{tpu_custom_call.1} parent=1 // pred_region
      _
    $region5: #{tpu_custom_call.1} parent=1 // pred_fallthru
      _
    // Predicated region
    $region6: #{tpu_custom_call.1} parent=1 // pred_check
      _
    $region7: #{tpu_custom_call.1} parent=1 // pred_check_branch
      %26 = sbr.rel (0) target = $region9
    $region8: #{tpu_custom_call.1} parent=1 // pred_region
      _
    $region9: #{tpu_custom_call.1} parent=1 // pred_fallthru
      _
    // Predicated region
    $region10: #{tpu_custom_call.1} parent=1 // pred_check
      _
    $region11: #{tpu_custom_call.1} parent=1 // pred_check_branch
      %28 = sbr.rel (0) target = $region13
    $region12: #{tpu_custom_call.1} parent=1 // pred_region
      %s30 = ssub.s32 2048, 2048
      %31 = vsyncadd [#allocation3], %s30
      %s32 = sshll.u32 [#allocation2], 4
      %s33 = int_to_ptr.vmem [resolvable:$true] %s32
      %38 = dma.hbm_to_vmem [thread:$0]  %s2, 2048, %s33, [#allocation3], 128, 128, 8
    $region13: #{tpu_custom_call.1} parent=1 // pred_fallthru
      _
    // Predicated region
    $region14: #{tpu_custom_call.1} parent=1 // pred_check
      _
    $region15: #{tpu_custom_call.1} parent=1 // pred_check_branch
      %40 = sbr.rel (0) target = $region17
    $region16: #{tpu_custom_call.1} parent=1 // pred_region
      _
    $region17: #{tpu_custom_call.1} parent=1 // pred_fallthru
      _
    // Predicated region
    $region18: #{tpu_custom_call.1} parent=1 // pred_check
      _
    $region19: #{tpu_custom_call.1} parent=1 // pred_check_branch
      %42 = sbr.rel (0) target = $region21
    $region20: #{tpu_custom_call.1} parent=1 // pred_region
      _
    $region21: #{tpu_custom_call.1} parent=1 // pred_fallthru
      _
    // Predicated region
    $region22: #{tpu_custom_call.1} parent=1 // pred_check
      _
    $region23: #{tpu_custom_call.1} parent=1 // pred_check_branch
      %44 = sbr.rel (0) target = $region25
    $region24: #{tpu_custom_call.1} parent=1 // pred_region
      _
    $region25: #{tpu_custom_call.1} parent=1 // pred_fallthru
      _
    // Predicated region
    $region26: #{tpu_custom_call.1} parent=1 // pred_check
      _
    $region27: #{tpu_custom_call.1} parent=1 // pred_check_branch
      %46 = sbr.rel (0) target = $region29
    $region28: #{tpu_custom_call.1} parent=1 // pred_region
      _
    $region29: #{tpu_custom_call.1} parent=1 // pred_fallthru
      _
    // Predicated region
    $region30: #{tpu_custom_call.1} parent=1 // pred_check
      _
    $region31: #{tpu_custom_call.1} parent=1 // pred_check_branch
      %48 = sbr.rel (0) target = $region33
    $region32: #{tpu_custom_call.1} parent=1 // pred_region
      _
    $region33: #{tpu_custom_call.1} parent=1 // pred_fallthru
      _
    // Predicated region
    $region34: #{tpu_custom_call.1} parent=1 // pred_check
      _
    $region35: #{tpu_custom_call.1} parent=1 // pred_check_branch
      %50 = sbr.rel (0) target = $region37
    $region36: #{tpu_custom_call.1} parent=1 // pred_region
      _
    $region37: #{tpu_custom_call.1} parent=1 // pred_fallthru
      _
    // Predicated region
    $region38: #{tpu_custom_call.1} parent=1 // pred_check
      _
    $region39: #{tpu_custom_call.1} parent=1 // pred_check_branch
      %52 = sbr.rel (0) target = $region41
    $region40: #{tpu_custom_call.1} parent=1 // pred_region
      %s54 = ssub.s32 1024, 1024
      %55 = vsyncadd [#allocation6], %s54
      %s56 = sshll.u32 [#allocation5], 4
      %s57 = int_to_ptr.vmem [resolvable:$true] %s56
      %62 = dma.hbm_to_vmem [thread:$0]  %s9, 1024, %s57, [#allocation6], 64, 64, 4
    $region41: #{tpu_custom_call.1} parent=1 // pred_fallthru
      _
    // Predicated region
    $region42: #{tpu_custom_call.1} parent=1 // pred_check
      _
    $region43: #{tpu_custom_call.1} parent=1 // pred_check_branch
      %64 = sbr.rel (0) target = $region45
    $region44: #{tpu_custom_call.1} parent=1 // pred_region
      _
    $region45: #{tpu_custom_call.1} parent=1 // pred_fallthru
      _
    // Predicated region
    $region46: #{tpu_custom_call.1} parent=1 // pred_check
      _
    $region47: #{tpu_custom_call.1} parent=1 // pred_check_branch
      %66 = sbr.rel (0) target = $region49
    $region48: #{tpu_custom_call.1} parent=1 // pred_region
      _
    $region49: #{tpu_custom_call.1} parent=1 // pred_fallthru
      _
    // Predicated region
    $region50: #{tpu_custom_call.1} parent=1 // pred_check
      _
    $region51: #{tpu_custom_call.1} parent=1 // pred_check_branch
      %68 = sbr.rel (0) target = $region53
    $region52: #{tpu_custom_call.1} parent=1 // pred_region
      _
    $region53: #{tpu_custom_call.1} parent=1 // pred_fallthru
      _
    // Predicated region
    $region54: #{tpu_custom_call.1} parent=1 // pred_check
      _
    $region55: #{tpu_custom_call.1} parent=1 // pred_check_branch
      %70 = sbr.rel (0) target = $region57
    $region56: #{tpu_custom_call.1} parent=1 // pred_region
      %s72 = ssub.s32 1024, 1024
      %73 = vsyncadd [#allocation6], %s72
      %s74 = sshll.u32 [#allocation7], 4
      %s75 = int_to_ptr.vmem [resolvable:$true] %s74
      %80 = dma.hbm_to_vmem [thread:$0]  %s13, 1024, %s75, [#allocation6], 64, 64, 4
    $region57: #{tpu_custom_call.1} parent=1 // pred_fallthru
      _
    // Predicated region
    $region58: #{tpu_custom_call.1} parent=1 // pred_check
      _
    $region59: #{tpu_custom_call.1} parent=1 // pred_check_branch
      %82 = sbr.rel (0) target = $region61
    $region60: #{tpu_custom_call.1} parent=1 // pred_region
      _
    $region61: #{tpu_custom_call.1} parent=1 // pred_fallthru
      _
    // Predicated region
    $region62: #{tpu_custom_call.1} parent=1 // pred_check
      _
    $region63: #{tpu_custom_call.1} parent=1 // pred_check_branch
      %84 = sbr.rel (0) target = $region65
    $region64: #{tpu_custom_call.1} parent=1 // pred_region
      %85 = dma.done [#allocation3], 2048
    $region65: #{tpu_custom_call.1} parent=1 // pred_fallthru
      _
    // Predicated region
    $region66: #{tpu_custom_call.1} parent=1 // pred_check
      _
    $region67: #{tpu_custom_call.1} parent=1 // pred_check_branch
      %87 = sbr.rel (0) target = $region69
    $region68: #{tpu_custom_call.1} parent=1 // pred_region
      %88 = dma.done [#allocation6], 1024
    $region69: #{tpu_custom_call.1} parent=1 // pred_fallthru
      _
    // Predicated region
    $region70: #{tpu_custom_call.1} parent=1 // pred_check
      _
    $region71: #{tpu_custom_call.1} parent=1 // pred_check_branch
      %90 = sbr.rel (0) target = $region73
    $region72: #{tpu_custom_call.1} parent=1 // pred_region
      %91 = dma.done [#allocation6], 1024
    $region73: #{tpu_custom_call.1} parent=1 // pred_fallthru
      _
    %v93 = vld [vmem:[%s0] sm:$0xff]
    %v94 = vld [vmem:[%s0 + $0x8] sm:$0xff]
    %v95 = vld [vmem:[%s0 + $0x10] sm:$0xff]
    %v96 = vld [vmem:[%s0 + $0x18] sm:$0xff]
    %v97 = vlaneseq
    %v98 = vand.u32 %v97, 127
    %99 = vset.pattern.permute.xlu0 0
    %100 = vperm.xlu0 %99, %v93
    %v101 = vpop.permute.xlu0 %100
    %102 = vset.pattern.permute.xlu0 0
    %103 = vperm.xlu0 %102, %v94
    %v104 = vpop.permute.xlu0 %103
    %105 = vset.pattern.permute.xlu0 0
    %106 = vperm.xlu0 %105, %v95
    %v107 = vpop.permute.xlu0 %106
    %108 = vset.pattern.permute.xlu0 0
    %109 = vperm.xlu0 %108, %v96
    %v110 = vpop.permute.xlu0 %109
    %vm111 = vcmp.eq.s32.totalorder %v98, %v101
    %vm112 = vcmp.eq.s32.totalorder %v98, %v104
    %vm113 = vcmp.eq.s32.totalorder %v98, %v107
    %vm114 = vcmp.eq.s32.totalorder %v98, %v110
    %v115 = vsel %vm111, 1.0, 0.0
    %v116 = vsel %vm112, 1.0, 0.0
    %v117 = vsel %vm113, 1.0, 0.0
    %v118 = vsel %vm114, 1.0, 0.0
    %119 = vset.pattern.permute.xlu0 1
    %120 = vperm.xlu0 %119, %v93
    %v121 = vpop.permute.xlu0 %120
    %122 = vset.pattern.permute.xlu0 1
    %123 = vperm.xlu0 %122, %v94
    %v124 = vpop.permute.xlu0 %123
    %125 = vset.pattern.permute.xlu0 1
    %126 = vperm.xlu0 %125, %v95
    %v127 = vpop.permute.xlu0 %126
    %128 = vset.pattern.permute.xlu0 1
    %129 = vperm.xlu0 %128, %v96
    %v130 = vpop.permute.xlu0 %129
    %vm131 = vcmp.eq.s32.totalorder %v98, %v121
    %vm132 = vcmp.eq.s32.totalorder %v98, %v124
    %vm133 = vcmp.eq.s32.totalorder %v98, %v127
    %vm134 = vcmp.eq.s32.totalorder %v98, %v130
    %v135 = vsel %vm131, 1.0, 0.0
    %v136 = vsel %vm132, 1.0, 0.0
    %v137 = vsel %vm133, 1.0, 0.0
    %v138 = vsel %vm134, 1.0, 0.0
    %v139 = vadd.f32 %v115, %v135
    %v140 = vadd.f32 %v116, %v136
    %v141 = vadd.f32 %v117, %v137
    %v142 = vadd.f32 %v118, %v138
    %143 = vset.pattern.permute.xlu0 2
    %144 = vperm.xlu0 %143, %v93
    %v145 = vpop.permute.xlu0 %144
    %146 = vset.pattern.permute.xlu0 2
    %147 = vperm.xlu0 %146, %v94
    %v148 = vpop.permute.xlu0 %147
    %149 = vset.pattern.permute.xlu0 2
    %150 = vperm.xlu0 %149, %v95
    %v151 = vpop.permute.xlu0 %150
    %152 = vset.pattern.permute.xlu0 2
    %153 = vperm.xlu0 %152, %v96
    %v154 = vpop.permute.xlu0 %153
    %vm155 = vcmp.eq.s32.totalorder %v98, %v145
    %vm156 = vcmp.eq.s32.totalorder %v98, %v148
    %vm157 = vcmp.eq.s32.totalorder %v98, %v151
    %vm158 = vcmp.eq.s32.totalorder %v98, %v154
    %v159 = vsel %vm155, 1.0, 0.0
    %v160 = vsel %vm156, 1.0, 0.0
    %v161 = vsel %vm157, 1.0, 0.0
    %v162 = vsel %vm158, 1.0, 0.0
    %v163 = vadd.f32 %v139, %v159
    %v164 = vadd.f32 %v140, %v160
    %v165 = vadd.f32 %v141, %v161
    %v166 = vadd.f32 %v142, %v162
    %167 = vset.pattern.permute.xlu0 3
    %168 = vperm.xlu0 %167, %v93
    %v169 = vpop.permute.xlu0 %168
    %170 = vset.pattern.permute.xlu0 3
    %171 = vperm.xlu0 %170, %v94
    %v172 = vpop.permute.xlu0 %171
    %173 = vset.pattern.permute.xlu0 3
    %174 = vperm.xlu0 %173, %v95
    %v175 = vpop.permute.xlu0 %174
    %176 = vset.pattern.permute.xlu0 3
    %177 = vperm.xlu0 %176, %v96
    %v178 = vpop.permute.xlu0 %177
    %vm179 = vcmp.eq.s32.totalorder %v98, %v169
    %vm180 = vcmp.eq.s32.totalorder %v98, %v172
    %vm181 = vcmp.eq.s32.totalorder %v98, %v175
    %vm182 = vcmp.eq.s32.totalorder %v98, %v178
    %v183 = vsel %vm179, 1.0, 0.0
    %v184 = vsel %vm180, 1.0, 0.0
    %v185 = vsel %vm181, 1.0, 0.0
    %v186 = vsel %vm182, 1.0, 0.0
    %v187 = vadd.f32 %v163, %v183
    %v188 = vadd.f32 %v164, %v184
    %v189 = vadd.f32 %v165, %v185
    %v190 = vadd.f32 %v166, %v186
    %v191 = vld [vmem:[#allocation2] sm:$0xff]
    %v192 = vld [vmem:[#allocation2 + $0x8] sm:$0xff]
    %v193 = vld [vmem:[#allocation2 + $0x10] sm:$0xff]
    %v194 = vld [vmem:[#allocation2 + $0x18] sm:$0xff]
    %v195 = vld [vmem:[#allocation2 + $0x20] sm:$0xff]
    %v196 = vld [vmem:[#allocation2 + $0x28] sm:$0xff]
    %v197 = vld [vmem:[#allocation2 + $0x30] sm:$0xff]
    %v198 = vld [vmem:[#allocation2 + $0x38] sm:$0xff]
    %v199 = vld [vmem:[#allocation2 + $0x40] sm:$0xff]
    %v200 = vld [vmem:[#allocation2 + $0x48] sm:$0xff]
    %v201 = vld [vmem:[#allocation2 + $0x50] sm:$0xff]
    %v202 = vld [vmem:[#allocation2 + $0x58] sm:$0xff]
    %v203 = vld [vmem:[#allocation2 + $0x60] sm:$0xff]
    %v204 = vld [vmem:[#allocation2 + $0x68] sm:$0xff]
    %v205 = vld [vmem:[#allocation2 + $0x70] sm:$0xff]
    %v206 = vld [vmem:[#allocation2 + $0x78] sm:$0xff]
    %207 = vmatprep.subr.mxu0 0.0
    %208 = vmatpush1.msra.mxu0 %v191
    %209 = vmatprep.subr.mxu0 0.0
    %210 = vmatpush1.msra.mxu0 %v192
    %211 = vmatprep.subr.mxu0 0.0
    %212 = vmatpush1.msra.mxu0 %v193
    %213 = vmatprep.subr.mxu0 0.0
    %214 = vmatpush1.msra.mxu0 %v194
    %215 = vmatprep.subr.mxu0 0.0
    %216 = vmatpush1.msra.mxu0 %v195
    %217 = vmatprep.subr.mxu0 0.0
    %218 = vmatpush1.msra.mxu0 %v196
    %219 = vmatprep.subr.mxu0 0.0
    %220 = vmatpush1.msra.mxu0 %v197
    %221 = vmatprep.subr.mxu0 0.0
    %222 = vmatpush1.msra.mxu0 %v198
    %223 = vmatprep.subr.mxu0 0.0
    %224 = vmatpush1.msra.mxu0 %v199
    %225 = vmatprep.subr.mxu0 0.0
    %226 = vmatpush1.msra.mxu0 %v200
    %227 = vmatprep.subr.mxu0 0.0
    %228 = vmatpush1.msra.mxu0 %v201
    %229 = vmatprep.subr.mxu0 0.0
    %230 = vmatpush1.msra.mxu0 %v202
    %231 = vmatprep.subr.mxu0 0.0
    %232 = vmatpush1.msra.mxu0 %v203
    %233 = vmatprep.subr.mxu0 0.0
    %234 = vmatpush1.msra.mxu0 %v204
    %235 = vmatprep.subr.mxu0 0.0
    %236 = vmatpush1.msra.mxu0 %v205
    %237 = vmatprep.subr.mxu0 0.0
    %238 = vmatpush1.msra.mxu0 %v206
    %239 = vmatprep.subr.mxu0 0.0
    %240 = vmatpush1.msra.mxu0 0.0
    %241 = vmatprep.subr.mxu0 0.0
    %242 = vmatpush1.msra.mxu0 0.0
    %243 = vmatprep.subr.mxu0 0.0
    %244 = vmatpush1.msra.mxu0 0.0
    %245 = vmatprep.subr.mxu0 0.0
    %246 = vmatpush1.msra.mxu0 0.0
    %247 = vmatprep.subr.mxu0 0.0
    %248 = vmatpush1.msra.mxu0 0.0
    %249 = vmatprep.subr.mxu0 0.0
    %250 = vmatpush1.msra.mxu0 0.0
    %251 = vmatprep.subr.mxu0 0.0
    %252 = vmatpush1.msra.mxu0 0.0
    %253 = vmatprep.subr.mxu0 0.0
    %254 = vmatpush1.msra.mxu0 0.0
    %255 = vmatprep.subr.mxu0 0.0
    %256 = vmatpush1.msra.mxu0 0.0
    %257 = vmatprep.subr.mxu0 0.0
    %258 = vmatpush1.msra.mxu0 0.0
    %259 = vmatprep.subr.mxu0 0.0
    %260 = vmatpush1.msra.mxu0 0.0
    %261 = vmatprep.subr.mxu0 0.0
    %262 = vmatpush1.msra.mxu0 0.0
    %263 = vmatprep.subr.mxu0 0.0
    %264 = vmatpush1.msra.mxu0 0.0
    %265 = vmatprep.subr.mxu0 0.0
    %266 = vmatpush1.msra.mxu0 0.0
    %267 = vmatprep.subr.mxu0 0.0
    %268 = vmatpush1.msra.mxu0 0.0
    %269 = vmatprep.subr.mxu0 0.0
    %270 = vmatpush1.msra.mxu0 0.0
    %271 = vmatprep.mubr.f32.mxu0 0.0
    %272 = vmatmul.mubr.f32.gmra.mrb[0].mxu0 %v187
    %v273 = vpop.f32.mrb[0].mxu0
    %v274 = vadd.f32 0.0, %v273
    %v275 = vpop.f32.mrb[0].mxu0
    %276 = vmatprep.mubr.f32.mxu0 0.0
    %277 = vmatmul.mubr.f32.gmra.mrb[0].mxu0 %v188
    %v278 = vpop.f32.mrb[0].mxu0
    %v279 = vadd.f32 0.0, %v278
    %v280 = vpop.f32.mrb[0].mxu0
    %281 = vmatprep.mubr.f32.mxu0 0.0
    %282 = vmatmul.mubr.f32.gmra.mrb[0].mxu0 %v189
    %v283 = vpop.f32.mrb[0].mxu0
    %v284 = vadd.f32 0.0, %v283
    %v285 = vpop.f32.mrb[0].mxu0
    %286 = vmatprep.mubr.f32.mxu0 0.0
    %287 = vmatmul.mubr.f32.gmra.mrb[0].mxu0 %v190
    %v288 = vpop.f32.mrb[0].mxu0
    %v289 = vadd.f32 0.0, %v288
    %v290 = vpop.f32.mrb[0].mxu0
    %291 = vdwg.mxu0
    %vm292 = vcmp.lt.s32.totalorder %v98, 32
    %v293 = vld [vmem:[%s1] sm:$0xf]
    %v294 = vld [vmem:[%s1 + $0x4] sm:$0xf]
    %v295 = vld [vmem:[%s1 + $0x8] sm:$0xf]
    %v296 = vld [vmem:[%s1 + $0xc] sm:$0xf]
    %v297 = vld [vmem:[%s3] sm:$0xf]
    %v298 = vld [vmem:[%s3 + $0x4] sm:$0xf]
    %v299 = vld [vmem:[%s4] sm:$0x1]
    %v301 = vlaneseq
    %v302 = vshrl.u32 %v301, 7
    %v303 = vsub.s32 0, %v302
    %v304 = vrot.slane %v299, %v303
    %v310 = vunpack.c.l.b16 %v293
    %v311 = vunpack.c.l.b16 %v294
    %v312 = vunpack.c.l.b16 %v295
    %v313 = vunpack.c.l.b16 %v296
    %v314 = vpack.c.b16 %v311, %v310
    %v315 = vpack.c.b16 %v313, %v312
    %v318 = vunpack.c.l.b16 %v297
    %v319 = vunpack.c.l.b16 %v298
    %v320 = vpack.c.b16 %v319, %v318
    %vm322 = vcmask 130048
    %v324 = vsel %vm322, %v314, 0
    %v327 = vsel %vm322, %v315, 0
    %329 = vmatprep.subr.bf16.mxu0 0
    %330 = vmatpush1.bf16.msra.mxu0 %v320
    %331 = vmatprep.subr.bf16.mxu0 0
    %332 = vmatpush1.bf16.msra.mxu0 0
    %333 = vmatprep.subr.bf16.mxu0 0
    %334 = vmatpush1.bf16.msra.mxu0 0
    %335 = vmatprep.subr.bf16.mxu0 0
    %336 = vmatpush1.bf16.msra.mxu0 0
    %337 = vmatprep.subr.bf16.mxu0 0
    %338 = vmatpush1.bf16.msra.mxu0 0
    %339 = vmatprep.subr.bf16.mxu0 0
    %340 = vmatpush1.bf16.msra.mxu0 0
    %341 = vmatprep.subr.bf16.mxu0 0
    %342 = vmatpush1.bf16.msra.mxu0 0
    %343 = vmatprep.subr.bf16.mxu0 0
    %344 = vmatpush1.bf16.msra.mxu0 0
    %345 = vmatprep.subr.bf16.mxu0 0
    %346 = vmatpush1.bf16.msra.mxu0 0
    %347 = vmatprep.subr.bf16.mxu0 0
    %348 = vmatpush1.bf16.msra.mxu0 0
    %349 = vmatprep.subr.bf16.mxu0 0
    %350 = vmatpush1.bf16.msra.mxu0 0
    %351 = vmatprep.subr.bf16.mxu0 0
    %352 = vmatpush1.bf16.msra.mxu0 0
    %353 = vmatprep.subr.bf16.mxu0 0
    %354 = vmatpush1.bf16.msra.mxu0 0
    %355 = vmatprep.subr.bf16.mxu0 0
    %356 = vmatpush1.bf16.msra.mxu0 0
    %357 = vmatprep.subr.bf16.mxu0 0
    %358 = vmatpush1.bf16.msra.mxu0 0
    %359 = vmatprep.subr.bf16.mxu0 0
    %360 = vmatpush1.bf16.msra.mxu0 0
    %361 = vmatprep.mubr.bf16.mxu0 0
    %362 = vmatmul.mubr.bf16.gmra.mrb[0].mxu0 %v324
    %v363 = vpop.f32.mrb[0].mxu0
    %v364 = vadd.f32 %v304, %v363
    %v365 = vpop.f32.mrb[0].mxu0
    %v366 = vpop.f32.mrb[0].mxu0
    %v367 = vadd.f32 %v304, %v366
    %v368 = vpop.f32.mrb[0].mxu0
    %369 = vmatprep.mubr.bf16.mxu0 0
    %370 = vmatmul.mubr.bf16.gmra.mrb[0].mxu0 %v327
    %v371 = vpop.f32.mrb[0].mxu0
    %v372 = vadd.f32 %v304, %v371
    %v373 = vpop.f32.mrb[0].mxu0
    %v374 = vpop.f32.mrb[0].mxu0
    %v375 = vadd.f32 %v304, %v374
    %v376 = vpop.f32.mrb[0].mxu0
    %377 = vdwg.mxu0
    %382 = vrot.lane.b32.xlu0 %v364, 127
    %v383 = vpop.permute.xlu0 %382
    %384 = vrot.lane.b32.xlu0 %v367, 127
    %v385 = vpop.permute.xlu0 %384
    %386 = vrot.lane.b32.xlu0 %v372, 127
    %v387 = vpop.permute.xlu0 %386
    %388 = vrot.lane.b32.xlu0 %v375, 127
    %v389 = vpop.permute.xlu0 %388
    %v394 = vadd.f32 %v274, %v383
    %v395 = vadd.f32 %v279, %v385
    %v396 = vadd.f32 %v284, %v387
    %v397 = vadd.f32 %v289, %v389
    %402 = vrot.lane.b32.xlu0 %v274, 120
    %v403 = vpop.permute.xlu0 %402
    %404 = vrot.lane.b32.xlu0 %v279, 120
    %v405 = vpop.permute.xlu0 %404
    %406 = vrot.lane.b32.xlu0 %v284, 120
    %v407 = vpop.permute.xlu0 %406
    %408 = vrot.lane.b32.xlu0 %v289, 120
    %v409 = vpop.permute.xlu0 %408
    %v414 = vadd.f32 %v274, %v403
    %v415 = vadd.f32 %v279, %v405
    %v416 = vadd.f32 %v284, %v407
    %v417 = vadd.f32 %v289, %v409
    %418 = vrot.lane.b32.xlu0 %v274, 112
    %v419 = vpop.permute.xlu0 %418
    %420 = vrot.lane.b32.xlu0 %v279, 112
    %v421 = vpop.permute.xlu0 %420
    %422 = vrot.lane.b32.xlu0 %v284, 112
    %v423 = vpop.permute.xlu0 %422
    %424 = vrot.lane.b32.xlu0 %v289, 112
    %v425 = vpop.permute.xlu0 %424
    %v430 = vadd.f32 %v414, %v419
    %v431 = vadd.f32 %v415, %v421
    %v432 = vadd.f32 %v416, %v423
    %v433 = vadd.f32 %v417, %v425
    %434 = vrot.lane.b32.xlu0 %v274, 104
    %v435 = vpop.permute.xlu0 %434
    %436 = vrot.lane.b32.xlu0 %v279, 104
    %v437 = vpop.permute.xlu0 %436
    %438 = vrot.lane.b32.xlu0 %v284, 104
    %v439 = vpop.permute.xlu0 %438
    %440 = vrot.lane.b32.xlu0 %v289, 104
    %v441 = vpop.permute.xlu0 %440
    %v446 = vadd.f32 %v430, %v435
    %v447 = vadd.f32 %v431, %v437
    %v448 = vadd.f32 %v432, %v439
    %v449 = vadd.f32 %v433, %v441
    %v450 = vmul.f32 %v446, %v446
    %v451 = vmul.f32 %v447, %v447
    %v452 = vmul.f32 %v448, %v448
    %v453 = vmul.f32 %v449, %v449
    %vm454 = vcmask 64512
    %v455 = vsel %vm454, %v450, 0.0
    %456 = vadd.xlane.f32.xlu0 %v455
    %v457 = vpop.xlane.xlu0 %456
    %v458 = vsel %vm454, %v451, 0.0
    %459 = vadd.xlane.f32.xlu0 %v458
    %v460 = vpop.xlane.xlu0 %459
    %v461 = vsel %vm454, %v452, 0.0
    %462 = vadd.xlane.f32.xlu0 %v461
    %v463 = vpop.xlane.xlu0 %462
    %v464 = vsel %vm454, %v453, 0.0
    %465 = vadd.xlane.f32.xlu0 %v464
    %v466 = vpop.xlane.xlu0 %465
    %v467 = vmul.f32 %v274, %v274
    %v468 = vmul.f32 %v279, %v279
    %v469 = vmul.f32 %v284, %v284
    %v470 = vmul.f32 %v289, %v289
    %v471 = vsel %vm292, %v467, 0.0
    %v472 = vsel %vm292, %v468, 0.0
    %v473 = vsel %vm292, %v469, 0.0
    %v474 = vsel %vm292, %v470, 0.0
    %475 = vadd.xlane.f32.xlu0 %v471
    %v476 = vpop.xlane.xlu0 %475
    %477 = vadd.xlane.f32.xlu0 %v472
    %v478 = vpop.xlane.xlu0 %477
    %479 = vadd.xlane.f32.xlu0 %v473
    %v480 = vpop.xlane.xlu0 %479
    %481 = vadd.xlane.f32.xlu0 %v474
    %v482 = vpop.xlane.xlu0 %481
    %v483 = vsub.f32 %v457, %v476
    %v484 = vsub.f32 %v460, %v478
    %v485 = vsub.f32 %v463, %v480
    %v486 = vsub.f32 %v466, %v482
    %v487 = vmul.f32 %v483, 0.5
    %v488 = vmul.f32 %v484, 0.5
    %v489 = vmul.f32 %v485, 0.5
    %v490 = vmul.f32 %v486, 0.5
    %v491 = vadd.f32 %v394, %v487
    %v492 = vadd.f32 %v395, %v488
    %v493 = vadd.f32 %v396, %v489
    %v494 = vadd.f32 %v397, %v490
    %496 = vset.pattern.permute.xlu0 32
    %497 = vperm.xlu0 %496, %v491
    %v498 = vpop.permute.xlu0 %497
    %501 = vset.pattern.permute.xlu0 32
    %502 = vperm.xlu0 %501, %v492
    %v503 = vpop.permute.xlu0 %502
    %506 = vset.pattern.permute.xlu0 32
    %507 = vperm.xlu0 %506, %v493
    %v508 = vpop.permute.xlu0 %507
    %511 = vset.pattern.permute.xlu0 32
    %512 = vperm.xlu0 %511, %v494
    %v513 = vpop.permute.xlu0 %512
    %v515 = vadd.f32 %v498, %v274
    %v516 = vadd.f32 %v503, %v279
    %v517 = vadd.f32 %v508, %v284
    %v518 = vadd.f32 %v513, %v289
    %v519 = vmax.f32 %v364, 0.0
    %v520 = vmax.f32 %v367, 0.0
    %v521 = vmax.f32 %v372, 0.0
    %v522 = vmax.f32 %v375, 0.0
    %v523 = vadd.f32 %v515, %v519
    %v524 = vadd.f32 %v516, %v520
    %v525 = vadd.f32 %v517, %v521
    %v526 = vadd.f32 %v518, %v522
    %v527 = vpack.c.bf16 %v524, %v523
    %v528 = vpack.c.bf16 %v526, %v525
    %v529 = vld [vmem:[%s5] sm:$0xf]
    %v530 = vld [vmem:[%s5 + $0x4] sm:$0xf]
    %v531 = vld [vmem:[%s5 + $0x8] sm:$0xf]
    %v532 = vld [vmem:[%s5 + $0xc] sm:$0xf]
    %v533 = vld [vmem:[%s5 + $0x10] sm:$0xf]
    %v534 = vld [vmem:[%s5 + $0x14] sm:$0xf]
    %v535 = vld [vmem:[%s5 + $0x18] sm:$0xf]
    %v536 = vld [vmem:[%s5 + $0x1c] sm:$0xf]
    %v537 = vld [vmem:[%s5 + $0x20] sm:$0xf]
    %v538 = vld [vmem:[%s5 + $0x24] sm:$0xf]
    %v539 = vld [vmem:[%s5 + $0x28] sm:$0xf]
    %v540 = vld [vmem:[%s5 + $0x2c] sm:$0xf]
    %v541 = vld [vmem:[%s5 + $0x30] sm:$0xf]
    %v542 = vld [vmem:[%s5 + $0x34] sm:$0xf]
    %v543 = vld [vmem:[%s5 + $0x38] sm:$0xf]
    %v544 = vld [vmem:[%s5 + $0x3c] sm:$0xf]
    %v545 = vld [vmem:[%s6] sm:$0x1]
    %v547 = vlaneseq
    %v548 = vshrl.u32 %v547, 7
    %v549 = vsub.s32 0, %v548
    %v550 = vrot.slane %v545, %v549
    %v568 = vunpack.c.l.b16 %v529
    %v569 = vunpack.c.l.b16 %v530
    %v570 = vunpack.c.l.b16 %v531
    %v571 = vunpack.c.l.b16 %v532
    %v572 = vunpack.c.l.b16 %v533
    %v573 = vunpack.c.l.b16 %v534
    %v574 = vunpack.c.l.b16 %v535
    %v575 = vunpack.c.l.b16 %v536
    %v576 = vunpack.c.l.b16 %v537
    %v577 = vunpack.c.l.b16 %v538
    %v578 = vunpack.c.l.b16 %v539
    %v579 = vunpack.c.l.b16 %v540
    %v580 = vunpack.c.l.b16 %v541
    %v581 = vunpack.c.l.b16 %v542
    %v582 = vunpack.c.l.b16 %v543
    %v583 = vunpack.c.l.b16 %v544
    %v584 = vpack.c.b16 %v569, %v568
    %v585 = vpack.c.b16 %v571, %v570
    %v586 = vpack.c.b16 %v573, %v572
    %v587 = vpack.c.b16 %v575, %v574
    %v588 = vpack.c.b16 %v577, %v576
    %v589 = vpack.c.b16 %v579, %v578
    %v590 = vpack.c.b16 %v581, %v580
    %v591 = vpack.c.b16 %v583, %v582
    %600 = vmatprep.subr.bf16.mxu0 0
    %601 = vmatpush1.bf16.msra.mxu0 %v584
    %602 = vmatprep.subr.bf16.mxu0 0
    %603 = vmatpush1.bf16.msra.mxu0 %v585
    %604 = vmatprep.subr.bf16.mxu0 0
    %605 = vmatpush1.bf16.msra.mxu0 %v586
    %606 = vmatprep.subr.bf16.mxu0 0
    %607 = vmatpush1.bf16.msra.mxu0 %v587
    %608 = vmatprep.subr.bf16.mxu0 0
    %609 = vmatpush1.bf16.msra.mxu0 %v588
    %610 = vmatprep.subr.bf16.mxu0 0
    %611 = vmatpush1.bf16.msra.mxu0 %v589
    %612 = vmatprep.subr.bf16.mxu0 0
    %613 = vmatpush1.bf16.msra.mxu0 %v590
    %614 = vmatprep.subr.bf16.mxu0 0
    %615 = vmatpush1.bf16.msra.mxu0 %v591
    %616 = vmatprep.subr.bf16.mxu0 0
    %617 = vmatpush1.bf16.msra.mxu0 0
    %618 = vmatprep.subr.bf16.mxu0 0
    %619 = vmatpush1.bf16.msra.mxu0 0
    %620 = vmatprep.subr.bf16.mxu0 0
    %621 = vmatpush1.bf16.msra.mxu0 0
    %622 = vmatprep.subr.bf16.mxu0 0
    %623 = vmatpush1.bf16.msra.mxu0 0
    %624 = vmatprep.subr.bf16.mxu0 0
    %625 = vmatpush1.bf16.msra.mxu0 0
    %626 = vmatprep.subr.bf16.mxu0 0
    %627 = vmatpush1.bf16.msra.mxu0 0
    %628 = vmatprep.subr.bf16.mxu0 0
    %629 = vmatpush1.bf16.msra.mxu0 0
    %630 = vmatprep.subr.bf16.mxu0 0
    %631 = vmatpush1.bf16.msra.mxu0 0
    %632 = vmatprep.mubr.bf16.mxu0 0
    %633 = vmatmul.mubr.bf16.gmra.mrb[0].mxu0 %v527
    %v634 = vpop.f32.mrb[0].mxu0
    %v635 = vadd.f32 %v550, %v634
    %v636 = vpop.f32.mrb[0].mxu0
    %v637 = vpop.f32.mrb[0].mxu0
    %v638 = vadd.f32 %v550, %v637
    %v639 = vpop.f32.mrb[0].mxu0
    %640 = vmatprep.mubr.bf16.mxu0 0
    %641 = vmatmul.mubr.bf16.gmra.mrb[0].mxu0 %v528
    %v642 = vpop.f32.mrb[0].mxu0
    %v643 = vadd.f32 %v550, %v642
    %v644 = vpop.f32.mrb[0].mxu0
    %v645 = vpop.f32.mrb[0].mxu0
    %v646 = vadd.f32 %v550, %v645
    %v647 = vpop.f32.mrb[0].mxu0
    %648 = vdwg.mxu0
    %v649 = vld [vmem:[%s7] sm:$0x1]
    %v651 = vlaneseq
    %v652 = vshrl.u32 %v651, 7
    %v653 = vsub.s32 0, %v652
    %v654 = vrot.slane %v649, %v653
    %v656 = vmul.f32 %v635, %v654
    %v657 = vmul.f32 %v638, %v654
    %v658 = vmul.f32 %v643, %v654
    %v659 = vmul.f32 %v646, %v654
    %v660 = vld [vmem:[%s8] sm:$0x1]
    %v662 = vlaneseq
    %v663 = vshrl.u32 %v662, 7
    %v664 = vsub.s32 0, %v663
    %v665 = vrot.slane %v660, %v664
    %v667 = vadd.f32 %v656, %v665
    %v668 = vadd.f32 %v657, %v665
    %v669 = vadd.f32 %v658, %v665
    %v670 = vadd.f32 %v659, %v665
    %v671 = vmax.f32 %v667, 0.0
    %v672 = vmax.f32 %v668, 0.0
    %v673 = vmax.f32 %v669, 0.0
    %v674 = vmax.f32 %v670, 0.0
    %v675 = vpack.c.bf16 %v672, %v671
    %v676 = vpack.c.bf16 %v674, %v673
    %v677 = vld [vmem:[#allocation5] sm:$0xf]
    %v678 = vld [vmem:[#allocation5 + $0x4] sm:$0xf]
    %v679 = vld [vmem:[#allocation5 + $0x8] sm:$0xf]
    %v680 = vld [vmem:[#allocation5 + $0xc] sm:$0xf]
    %v681 = vld [vmem:[#allocation5 + $0x10] sm:$0xf]
    %v682 = vld [vmem:[#allocation5 + $0x14] sm:$0xf]
    %v683 = vld [vmem:[#allocation5 + $0x18] sm:$0xf]
    %v684 = vld [vmem:[#allocation5 + $0x1c] sm:$0xf]
    %v685 = vld [vmem:[#allocation5 + $0x20] sm:$0xf]
    %v686 = vld [vmem:[#allocation5 + $0x24] sm:$0xf]
    %v687 = vld [vmem:[#allocation5 + $0x28] sm:$0xf]
    %v688 = vld [vmem:[#allocation5 + $0x2c] sm:$0xf]
    %v689 = vld [vmem:[#allocation5 + $0x30] sm:$0xf]
    %v690 = vld [vmem:[#allocation5 + $0x34] sm:$0xf]
    %v691 = vld [vmem:[#allocation5 + $0x38] sm:$0xf]
    %v692 = vld [vmem:[#allocation5 + $0x3c] sm:$0xf]
    %v693 = vld [vmem:[%s10] sm:$0x1]
    %v695 = vlaneseq
    %v696 = vshrl.u32 %v695, 7
    %v697 = vsub.s32 0, %v696
    %v698 = vrot.slane %v693, %v697
    %v716 = vunpack.c.l.b16 %v677
    %v717 = vunpack.c.l.b16 %v678
    %v718 = vunpack.c.l.b16 %v679
    %v719 = vunpack.c.l.b16 %v680
    %v720 = vunpack.c.l.b16 %v681
    %v721 = vunpack.c.l.b16 %v682
    %v722 = vunpack.c.l.b16 %v683
    %v723 = vunpack.c.l.b16 %v684
    %v724 = vunpack.c.l.b16 %v685
    %v725 = vunpack.c.l.b16 %v686
    %v726 = vunpack.c.l.b16 %v687
    %v727 = vunpack.c.l.b16 %v688
    %v728 = vunpack.c.l.b16 %v689
    %v729 = vunpack.c.l.b16 %v690
    %v730 = vunpack.c.l.b16 %v691
    %v731 = vunpack.c.l.b16 %v692
    %v732 = vpack.c.b16 %v717, %v716
    %v733 = vpack.c.b16 %v719, %v718
    %v734 = vpack.c.b16 %v721, %v720
    %v735 = vpack.c.b16 %v723, %v722
    %v736 = vpack.c.b16 %v725, %v724
    %v737 = vpack.c.b16 %v727, %v726
    %v738 = vpack.c.b16 %v729, %v728
    %v739 = vpack.c.b16 %v731, %v730
    %748 = vmatprep.subr.bf16.mxu0 0
    %749 = vmatpush1.bf16.msra.mxu0 %v732
    %750 = vmatprep.subr.bf16.mxu0 0
    %751 = vmatpush1.bf16.msra.mxu0 %v733
    %752 = vmatprep.subr.bf16.mxu0 0
    %753 = vmatpush1.bf16.msra.mxu0 %v734
    %754 = vmatprep.subr.bf16.mxu0 0
    %755 = vmatpush1.bf16.msra.mxu0 %v735
    %756 = vmatprep.subr.bf16.mxu0 0
    %757 = vmatpush1.bf16.msra.mxu0 %v736
    %758 = vmatprep.subr.bf16.mxu0 0
    %759 = vmatpush1.bf16.msra.mxu0 %v737
    %760 = vmatprep.subr.bf16.mxu0 0
    %761 = vmatpush1.bf16.msra.mxu0 %v738
    %762 = vmatprep.subr.bf16.mxu0 0
    %763 = vmatpush1.bf16.msra.mxu0 %v739
    %764 = vmatprep.subr.bf16.mxu0 0
    %765 = vmatpush1.bf16.msra.mxu0 0
    %766 = vmatprep.subr.bf16.mxu0 0
    %767 = vmatpush1.bf16.msra.mxu0 0
    %768 = vmatprep.subr.bf16.mxu0 0
    %769 = vmatpush1.bf16.msra.mxu0 0
    %770 = vmatprep.subr.bf16.mxu0 0
    %771 = vmatpush1.bf16.msra.mxu0 0
    %772 = vmatprep.subr.bf16.mxu0 0
    %773 = vmatpush1.bf16.msra.mxu0 0
    %774 = vmatprep.subr.bf16.mxu0 0
    %775 = vmatpush1.bf16.msra.mxu0 0
    %776 = vmatprep.subr.bf16.mxu0 0
    %777 = vmatpush1.bf16.msra.mxu0 0
    %778 = vmatprep.subr.bf16.mxu0 0
    %779 = vmatpush1.bf16.msra.mxu0 0
    %780 = vmatprep.mubr.bf16.mxu0 0
    %781 = vmatmul.mubr.bf16.gmra.mrb[0].mxu0 %v675
    %v782 = vpop.f32.mrb[0].mxu0
    %v783 = vadd.f32 %v698, %v782
    %v784 = vpop.f32.mrb[0].mxu0
    %v785 = vpop.f32.mrb[0].mxu0
    %v786 = vadd.f32 %v698, %v785
    %v787 = vpop.f32.mrb[0].mxu0
    %788 = vmatprep.mubr.bf16.mxu0 0
    %789 = vmatmul.mubr.bf16.gmra.mrb[0].mxu0 %v676
    %v790 = vpop.f32.mrb[0].mxu0
    %v791 = vadd.f32 %v698, %v790
    %v792 = vpop.f32.mrb[0].mxu0
    %v793 = vpop.f32.mrb[0].mxu0
    %v794 = vadd.f32 %v698, %v793
    %v795 = vpop.f32.mrb[0].mxu0
    %796 = vdwg.mxu0
    %v797 = vld [vmem:[%s11] sm:$0x1]
    %v799 = vlaneseq
    %v800 = vshrl.u32 %v799, 7
    %v801 = vsub.s32 0, %v800
    %v802 = vrot.slane %v797, %v801
    %v804 = vmul.f32 %v783, %v802
    %v805 = vmul.f32 %v786, %v802
    %v806 = vmul.f32 %v791, %v802
    %v807 = vmul.f32 %v794, %v802
    %v808 = vld [vmem:[%s12] sm:$0x1]
    %v810 = vlaneseq
    %v811 = vshrl.u32 %v810, 7
    %v812 = vsub.s32 0, %v811
    %v813 = vrot.slane %v808, %v812
    %v815 = vadd.f32 %v804, %v813
    %v816 = vadd.f32 %v805, %v813
    %v817 = vadd.f32 %v806, %v813
    %v818 = vadd.f32 %v807, %v813
    %v819 = vmax.f32 %v815, 0.0
    %v820 = vmax.f32 %v816, 0.0
    %v821 = vmax.f32 %v817, 0.0
    %v822 = vmax.f32 %v818, 0.0
    %v823 = vpack.c.bf16 %v820, %v819
    %v824 = vpack.c.bf16 %v822, %v821
    %v825 = vld [vmem:[#allocation7] sm:$0xf]
    %v826 = vld [vmem:[#allocation7 + $0x4] sm:$0xf]
    %v827 = vld [vmem:[#allocation7 + $0x8] sm:$0xf]
    %v828 = vld [vmem:[#allocation7 + $0xc] sm:$0xf]
    %v829 = vld [vmem:[#allocation7 + $0x10] sm:$0xf]
    %v830 = vld [vmem:[#allocation7 + $0x14] sm:$0xf]
    %v831 = vld [vmem:[#allocation7 + $0x18] sm:$0xf]
    %v832 = vld [vmem:[#allocation7 + $0x1c] sm:$0xf]
    %v833 = vld [vmem:[#allocation7 + $0x20] sm:$0xf]
    %v834 = vld [vmem:[#allocation7 + $0x24] sm:$0xf]
    %v835 = vld [vmem:[#allocation7 + $0x28] sm:$0xf]
    %v836 = vld [vmem:[#allocation7 + $0x2c] sm:$0xf]
    %v837 = vld [vmem:[#allocation7 + $0x30] sm:$0xf]
    %v838 = vld [vmem:[#allocation7 + $0x34] sm:$0xf]
    %v839 = vld [vmem:[#allocation7 + $0x38] sm:$0xf]
    %v840 = vld [vmem:[#allocation7 + $0x3c] sm:$0xf]
    %v841 = vld [vmem:[%s14] sm:$0x1]
    %v843 = vlaneseq
    %v844 = vshrl.u32 %v843, 7
    %v845 = vsub.s32 0, %v844
    %v846 = vrot.slane %v841, %v845
    %v864 = vunpack.c.l.b16 %v825
    %v865 = vunpack.c.l.b16 %v826
    %v866 = vunpack.c.l.b16 %v827
    %v867 = vunpack.c.l.b16 %v828
    %v868 = vunpack.c.l.b16 %v829
    %v869 = vunpack.c.l.b16 %v830
    %v870 = vunpack.c.l.b16 %v831
    %v871 = vunpack.c.l.b16 %v832
    %v872 = vunpack.c.l.b16 %v833
    %v873 = vunpack.c.l.b16 %v834
    %v874 = vunpack.c.l.b16 %v835
    %v875 = vunpack.c.l.b16 %v836
    %v876 = vunpack.c.l.b16 %v837
    %v877 = vunpack.c.l.b16 %v838
    %v878 = vunpack.c.l.b16 %v839
    %v879 = vunpack.c.l.b16 %v840
    %v880 = vpack.c.b16 %v865, %v864
    %v881 = vpack.c.b16 %v867, %v866
    %v882 = vpack.c.b16 %v869, %v868
    %v883 = vpack.c.b16 %v871, %v870
    %v884 = vpack.c.b16 %v873, %v872
    %v885 = vpack.c.b16 %v875, %v874
    %v886 = vpack.c.b16 %v877, %v876
    %v887 = vpack.c.b16 %v879, %v878
    %896 = vmatprep.subr.bf16.mxu0 0
    %897 = vmatpush1.bf16.msra.mxu0 %v880
    %898 = vmatprep.subr.bf16.mxu0 0
    %899 = vmatpush1.bf16.msra.mxu0 %v881
    %900 = vmatprep.subr.bf16.mxu0 0
    %901 = vmatpush1.bf16.msra.mxu0 %v882
    %902 = vmatprep.subr.bf16.mxu0 0
    %903 = vmatpush1.bf16.msra.mxu0 %v883
    %904 = vmatprep.subr.bf16.mxu0 0
    %905 = vmatpush1.bf16.msra.mxu0 %v884
    %906 = vmatprep.subr.bf16.mxu0 0
    %907 = vmatpush1.bf16.msra.mxu0 %v885
    %908 = vmatprep.subr.bf16.mxu0 0
    %909 = vmatpush1.bf16.msra.mxu0 %v886
    %910 = vmatprep.subr.bf16.mxu0 0
    %911 = vmatpush1.bf16.msra.mxu0 %v887
    %912 = vmatprep.subr.bf16.mxu0 0
    %913 = vmatpush1.bf16.msra.mxu0 0
    %914 = vmatprep.subr.bf16.mxu0 0
    %915 = vmatpush1.bf16.msra.mxu0 0
    %916 = vmatprep.subr.bf16.mxu0 0
    %917 = vmatpush1.bf16.msra.mxu0 0
    %918 = vmatprep.subr.bf16.mxu0 0
    %919 = vmatpush1.bf16.msra.mxu0 0
    %920 = vmatprep.subr.bf16.mxu0 0
    %921 = vmatpush1.bf16.msra.mxu0 0
    %922 = vmatprep.subr.bf16.mxu0 0
    %923 = vmatpush1.bf16.msra.mxu0 0
    %924 = vmatprep.subr.bf16.mxu0 0
    %925 = vmatpush1.bf16.msra.mxu0 0
    %926 = vmatprep.subr.bf16.mxu0 0
    %927 = vmatpush1.bf16.msra.mxu0 0
    %928 = vmatprep.mubr.bf16.mxu0 0
    %929 = vmatmul.mubr.bf16.gmra.mrb[0].mxu0 %v823
    %v930 = vpop.f32.mrb[0].mxu0
    %v931 = vadd.f32 %v846, %v930
    %v932 = vpop.f32.mrb[0].mxu0
    %v933 = vpop.f32.mrb[0].mxu0
    %v934 = vadd.f32 %v846, %v933
    %v935 = vpop.f32.mrb[0].mxu0
    %936 = vmatprep.mubr.bf16.mxu0 0
    %937 = vmatmul.mubr.bf16.gmra.mrb[0].mxu0 %v824
    %v938 = vpop.f32.mrb[0].mxu0
    %v939 = vadd.f32 %v846, %v938
    %v940 = vpop.f32.mrb[0].mxu0
    %v941 = vpop.f32.mrb[0].mxu0
    %v942 = vadd.f32 %v846, %v941
    %v943 = vpop.f32.mrb[0].mxu0
    %944 = vdwg.mxu0
    %vm945 = vcmp.lt.s32.totalorder %v98, 4
    %v946 = vsel %vm945, %v931, -1e+30
    %v947 = vsel %vm945, %v934, -1e+30
    %v948 = vsel %vm945, %v939, -1e+30
    %v949 = vsel %vm945, %v942, -1e+30
    %950 = vmax.xlane.f32.xlu0 %v946
    %v951 = vpop.xlane.xlu0 %950
    %952 = vmax.xlane.f32.xlu0 %v947
    %v953 = vpop.xlane.xlu0 %952
    %954 = vmax.xlane.f32.xlu0 %v948
    %v955 = vpop.xlane.xlu0 %954
    %956 = vmax.xlane.f32.xlu0 %v949
    %v957 = vpop.xlane.xlu0 %956
    %v958 = vsub.f32 %v946, %v951
    %v959 = vsub.f32 %v947, %v953
    %v960 = vsub.f32 %v948, %v955
    %v961 = vsub.f32 %v949, %v957
    %v962 = vmul.f32 %v958, 1.442695
    %v963 = vpow.pop %v962
    %v964 = vmul.f32 %v959, 1.442695
    %v965 = vpow.pop %v964
    %v966 = vmul.f32 %v960, 1.442695
    %v967 = vpow.pop %v966
    %v968 = vmul.f32 %v961, 1.442695
    %v969 = vpow.pop %v968
    %v970 = vsel %vm945, %v963, 0.0
    %v971 = vsel %vm945, %v965, 0.0
    %v972 = vsel %vm945, %v967, 0.0
    %v973 = vsel %vm945, %v969, 0.0
    %974 = vadd.xlane.f32.xlu0 %v970
    %v975 = vpop.xlane.xlu0 %974
    %976 = vadd.xlane.f32.xlu0 %v971
    %v977 = vpop.xlane.xlu0 %976
    %978 = vadd.xlane.f32.xlu0 %v972
    %v979 = vpop.xlane.xlu0 %978
    %980 = vadd.xlane.f32.xlu0 %v973
    %v981 = vpop.xlane.xlu0 %980
    %v982 = vrcp.pop %v975
    %v983 = vmul.f32 %v970, %v982
    %v984 = vrcp.pop %v977
    %v985 = vmul.f32 %v971, %v984
    %v986 = vrcp.pop %v979
    %v987 = vmul.f32 %v972, %v986
    %v988 = vrcp.pop %v981
    %v989 = vmul.f32 %v973, %v988
    %v990 = vcvt.s32.f32 %v98
    %v991 = vmul.f32 %v983, %v990
    %v992 = vmul.f32 %v985, %v990
    %v993 = vmul.f32 %v987, %v990
    %v994 = vmul.f32 %v989, %v990
    %995 = vadd.xlane.f32.xlu0 %v991
    %v996 = vpop.xlane.xlu0 %995
    %997 = vadd.xlane.f32.xlu0 %v992
    %v998 = vpop.xlane.xlu0 %997
    %999 = vadd.xlane.f32.xlu0 %v993
    %v1000 = vpop.xlane.xlu0 %999
    %1001 = vadd.xlane.f32.xlu0 %v994
    %v1002 = vpop.xlane.xlu0 %1001
    %vm1003 = vcmp.ge.f32.partialorder %v946, %v951
    %vm1004 = vcmp.ge.f32.partialorder %v947, %v953
    %vm1005 = vcmp.ge.f32.partialorder %v948, %v955
    %vm1006 = vcmp.ge.f32.partialorder %v949, %v957
    %v1007 = vsel %vm1003, %v98, 128
    %v1008 = vsel %vm1004, %v98, 128
    %v1009 = vsel %vm1005, %v98, 128
    %v1010 = vsel %vm1006, %v98, 128
    %v1011 = vand.u32 %v1007, 65535
    %v1012 = vshra.s32 %v1007, 16
    %v1013 = vcvt.s32.f32 %v1011
    %v1014 = vcvt.s32.f32 %v1012
    %1015 = vmin.xlane.f32.xlu0 %v1014
    %v1016 = vpop.xlane.xlu0 %1015
    %vm1017 = vcmp.eq.f32.partialorder %v1014, %v1016
    %v1018 = vsel %vm1017, %v1013, inf
    %1019 = vmin.xlane.f32.xlu0 %v1018
    %v1020 = vpop.xlane.xlu0 %1019
    %v1021 = vcvt.f32.s32 %v1020
    %v1022 = vcvt.f32.s32 %v1016
    %v1023 = vshll.u32 %v1022, 16
    %v1024 = vadd.s32 %v1023, %v1021
    %v1025 = vand.u32 %v1008, 65535
    %v1026 = vshra.s32 %v1008, 16
    %v1027 = vcvt.s32.f32 %v1025
    %v1028 = vcvt.s32.f32 %v1026
    %1029 = vmin.xlane.f32.xlu0 %v1028
    %v1030 = vpop.xlane.xlu0 %1029
    %vm1031 = vcmp.eq.f32.partialorder %v1028, %v1030
    %v1032 = vsel %vm1031, %v1027, inf
    %1033 = vmin.xlane.f32.xlu0 %v1032
    %v1034 = vpop.xlane.xlu0 %1033
    %v1035 = vcvt.f32.s32 %v1034
    %v1036 = vcvt.f32.s32 %v1030
    %v1037 = vshll.u32 %v1036, 16
    %v1038 = vadd.s32 %v1037, %v1035
    %v1039 = vand.u32 %v1009, 65535
    %v1040 = vshra.s32 %v1009, 16
    %v1041 = vcvt.s32.f32 %v1039
    %v1042 = vcvt.s32.f32 %v1040
    %1043 = vmin.xlane.f32.xlu0 %v1042
    %v1044 = vpop.xlane.xlu0 %1043
    %vm1045 = vcmp.eq.f32.partialorder %v1042, %v1044
    %v1046 = vsel %vm1045, %v1041, inf
    %1047 = vmin.xlane.f32.xlu0 %v1046
    %v1048 = vpop.xlane.xlu0 %1047
    %v1049 = vcvt.f32.s32 %v1048
    %v1050 = vcvt.f32.s32 %v1044
    %v1051 = vshll.u32 %v1050, 16
    %v1052 = vadd.s32 %v1051, %v1049
    %v1053 = vand.u32 %v1010, 65535
    %v1054 = vshra.s32 %v1010, 16
    %v1055 = vcvt.s32.f32 %v1053
    %v1056 = vcvt.s32.f32 %v1054
    %1057 = vmin.xlane.f32.xlu0 %v1056
    %v1058 = vpop.xlane.xlu0 %1057
    %vm1059 = vcmp.eq.f32.partialorder %v1056, %v1058
    %v1060 = vsel %vm1059, %v1055, inf
    %1061 = vmin.xlane.f32.xlu0 %v1060
    %v1062 = vpop.xlane.xlu0 %1061
    %v1063 = vcvt.f32.s32 %v1062
    %v1064 = vcvt.f32.s32 %v1058
    %v1065 = vshll.u32 %v1064, 16
    %v1066 = vadd.s32 %v1065, %v1063
    %vm1067 = vcmp.eq.s32.totalorder %v98, 0
    %v1068 = vsel %vm1067, %v996, 0.0
    %v1069 = vsel %vm1067, %v998, 0.0
    %v1070 = vsel %vm1067, %v1000, 0.0
    %v1071 = vsel %vm1067, %v1002, 0.0
    %vm1072 = vcmp.eq.s32.totalorder %v98, 1
    %v1073 = vcvt.s32.f32 %v1024
    %v1074 = vcvt.s32.f32 %v1038
    %v1075 = vcvt.s32.f32 %v1052
    %v1076 = vcvt.s32.f32 %v1066
    %v1077 = vsel %vm1072, %v1073, 0.0
    %v1078 = vsel %vm1072, %v1074, 0.0
    %v1079 = vsel %vm1072, %v1075, 0.0
    %v1080 = vsel %vm1072, %v1076, 0.0
    %v1081 = vadd.f32 %v1068, %v1077
    %v1082 = vadd.f32 %v1069, %v1078
    %v1083 = vadd.f32 %v1070, %v1079
    %v1084 = vadd.f32 %v1071, %v1080
    %1085 = vst [vmem:[#allocation8] sm:$0xff] %v1081
    %1086 = vst [vmem:[#allocation8 + $0x8] sm:$0xff] %v1082
    %1087 = vst [vmem:[#allocation8 + $0x10] sm:$0xff] %v1083
    %1088 = vst [vmem:[#allocation8 + $0x18] sm:$0xff] %v1084
    // Predicated region
    $region74: #{tpu_custom_call.1} parent=1 // pred_check
      _
    $region75: #{tpu_custom_call.1} parent=1 // pred_check_branch
      %1090 = sbr.rel (0) target = $region77
    $region76: #{tpu_custom_call.1} parent=1 // pred_region
      %s1092 = ssub.s32 512, 512
      %1093 = vsyncadd [#allocation4], %s1092
      %s1094 = sshll.u32 [#allocation8], 4
      %s1095 = int_to_ptr.vmem [resolvable:$true] %s1094
      %1100 = dma.vmem_to_hbm [thread:$0]  %s1095, 512, %s15, [#allocation4], 128, 128, 8
    $region77: #{tpu_custom_call.1} parent=1 // pred_fallthru
      _
    // Predicated region
    $region78: #{tpu_custom_call.1} parent=1 // pred_check
      _
    $region79: #{tpu_custom_call.1} parent=1 // pred_check_branch
      %1102 = sbr.rel (0) target = $region81
    $region80: #{tpu_custom_call.1} parent=1 // pred_region
      %1103 = dma.done [#allocation4], 512
    $region81: #{tpu_custom_call.1} parent=1 // pred_fallthru
      _
    %1104 = vsyncpa [#allocation3], 1
    %1105 = vsyncpa [#allocation6], 1
    %1106 = vsyncpa [#allocation4], 1

</llo_original>
